<compile_context>
chip_gen: v7x
topology: tpu7x:2x2x1
jax: 0.10.0
libtpu: 0.0.40
codegen_flags: <defaults>
</compile_context>

<pallas_src>
import math

import jax
import jax.numpy as jnp
from jax import lax
from jax.experimental import pallas as pl
from jax.experimental.pallas import tpu as pltpu


def _make_attention_kernel(tq, heads, dh):
    """Kernel body for one (batch, query-tile) grid step; all heads inside."""

    def kernel(x_ref, wq_ref, bq_ref, wk_ref, bk_ref, wv_ref, bv_ref,
               wo_ref, bo_ref, o_ref):
        qi = pl.program_id(1)

        x = x_ref[...]                                   # (S, Dp) bf16, full seq
        row0 = pl.multiple_of(qi * tq, tq)
        xq = x_ref[pl.ds(row0, tq), :]                   # (tq, Dp) bf16, q rows

        # Full-width projections (all heads at once -> wide MXU matmuls).
        # 1/sqrt(dh) is already folded into wq/bq host-side.
        q = jnp.dot(xq, wq_ref[...], preferred_element_type=jnp.float32) + bq_ref[...]
        k = jnp.dot(x, wk_ref[...], preferred_element_type=jnp.float32) + bk_ref[...]
        v = jnp.dot(x, wv_ref[...], preferred_element_type=jnp.float32) + bv_ref[...]

        q_bf = q.astype(jnp.bfloat16)                    # (tq, D)
        k_bf = k.astype(jnp.bfloat16)                    # (S,  D)
        v_bf = v.astype(jnp.bfloat16)                    # (S,  D)

        # Per-head attention (short statically-unrolled loop); head
        # contributions of the output projection accumulate in f32 and are
        # stored once -> a single lane-dense (tq, Dp) store per grid step.
        acc = jnp.zeros(o_ref.shape, jnp.float32)        # (tq, Dp)
        for h in range(heads):
            lo, hi = h * dh, (h + 1) * dh
            qh, kh, vh = q_bf[:, lo:hi], k_bf[:, lo:hi], v_bf[:, lo:hi]

            # scores = q_h @ k_h^T: contract last axes (no transpose).
            s = lax.dot_general(qh, kh, (((1,), (1,)), ((), ())),
                                preferred_element_type=jnp.float32)   # (tq, S)

            # f32 softmax; normalization deferred past the (tq,S)@(S,dh) matmul.
            m = jnp.max(s, axis=-1, keepdims=True)
            p = jnp.exp(s - m)
            denom = jnp.sum(p, axis=-1, keepdims=True)
            attn = jnp.dot(p.astype(jnp.bfloat16), vh,
                           preferred_element_type=jnp.float32)        # (tq, dh)
            attn = attn * pl.reciprocal(denom, approx=True)

            # Head h's slice of the output projection (rows lo:hi of wo).
            acc = acc + jnp.dot(attn.astype(jnp.bfloat16), wo_ref[lo:hi, :],
                                preferred_element_type=jnp.float32)   # (tq, Dp)

        o_ref[...] = (acc + bo_ref[...]).astype(o_ref.dtype)

    return kernel


def attention_forward(x, params, heads, *, tq=None):
    """x: (B, S, D) float32. params: dict of transposed f32 weights/biases."""
    B, S, D = x.shape
    assert D % heads == 0
    dh = D // heads
    Dp = -(-D // 128) * 128                      # pad feature dim to lane width
    pad_d = Dp - D

    if tq is None:
        tq = S if S <= 512 else 512              # whole sequence per step when small
    assert S % tq == 0 and (tq == S or tq % 8 == 0)
    nq = S // tq
    scale = 1.0 / math.sqrt(dh)

    bf16, f32 = jnp.bfloat16, jnp.float32

    # Host-side packing (in a real model this happens once at param-load time):
    # pad feature dim to 128 lanes, fold 1/sqrt(dh) into wq/bq, cast matmul
    # operands to bf16 (f32 accumulation in-kernel).
    def pad_rows(w):                             # (D, D) -> (Dp, D)
        return jnp.pad(w, ((0, pad_d), (0, 0))).astype(bf16)

    wq_p = pad_rows(params["wq"] * scale)
    wk_p = pad_rows(params["wk"])
    wv_p = pad_rows(params["wv"])
    bq_p = (params["bq"] * scale).astype(f32)    # (1, D)
    bk_p = params["bk"].astype(f32)
    bv_p = params["bv"].astype(f32)
    wo_p = jnp.pad(params["wo"], ((0, 0), (0, pad_d))).astype(bf16)   # (D, Dp)
    bo_p = jnp.pad(params["bo"], ((0, 0), (0, pad_d))).astype(f32)    # (1, Dp)
    x_p = jnp.pad(x, ((0, 0), (0, 0), (0, pad_d))).astype(bf16)       # (B, S, Dp)

    grid = (B, nq)                               # no reduction axis -> all parallel

    x_spec = pl.BlockSpec((pl.Squeezed(), S, Dp), lambda b, qi: (b, 0, 0))
    wi_spec = pl.BlockSpec((Dp, D), lambda b, qi: (0, 0))   # resident (fetched once)
    bi_spec = pl.BlockSpec((1, D), lambda b, qi: (0, 0))
    wo_spec = pl.BlockSpec((D, Dp), lambda b, qi: (0, 0))
    bo_spec = pl.BlockSpec((1, Dp), lambda b, qi: (0, 0))
    o_spec = pl.BlockSpec((pl.Squeezed(), tq, Dp), lambda b, qi: (b, qi, 0))

    # Advisory cost estimate (resident-weight scheme: weights read once).
    flops = int(2 * B * S * Dp * D * 3           # q/k/v projections
                + 2 * B * S * S * D * 2          # scores + attn @ v (all heads)
                + 2 * B * S * D * Dp)            # output projection
    transcendentals = int(B * heads * S * S)
    bytes_accessed = int(B * S * Dp * 2          # x
                         + B * S * Dp * 4        # output
                         + 4 * Dp * D * 2        # weights (resident, read once)
                         + (3 * D + Dp) * 4)     # biases

    # VMEM sized to actual residency; capped well under v7x's 64 MiB/TC.
    block_bytes = (2 * S * Dp * 2 + 2 * tq * Dp * 4
                   + 2 * 4 * Dp * D * 2 + 2 * (3 * D + Dp) * 4)
    interm_bytes = ((tq + 2 * S) * D * 6         # q/k/v f32 + bf16 copies
                    + 2 * tq * S * 4             # scores + p (one head live)
                    + tq * Dp * 4 + 2 * tq * dh * 4)
    vmem_limit = int(min(32 << 20,
                         max(4 << 20, block_bytes + interm_bytes + (2 << 20))))

    out_p = pl.pallas_call(
        _make_attention_kernel(tq, heads, dh),
        out_shape=jax.ShapeDtypeStruct((B, S, Dp), x.dtype),
        grid_spec=pltpu.PrefetchScalarGridSpec(
            num_scalar_prefetch=0,
            grid=grid,
            in_specs=[x_spec,
                      wi_spec, bi_spec,
                      wi_spec, bi_spec,
                      wi_spec, bi_spec,
                      wo_spec, bo_spec],
            out_specs=o_spec,
        ),
        compiler_params=pltpu.CompilerParams(
            dimension_semantics=("parallel", "parallel"),
            vmem_limit_bytes=vmem_limit),
        cost_estimate=pl.CostEstimate(
            flops=flops, transcendentals=transcendentals,
            bytes_accessed=bytes_accessed),
    )(x_p, wq_p, bq_p, wk_p, bk_p, wv_p, bv_p, wo_p, bo_p)

    return out_p[:, :, :D]


def init_params(key, in_features):
    """Deterministic synthetic init (uniform, like PyTorch Linear default)."""
    D = in_features
    bound = 1.0 / math.sqrt(D)
    keys = jax.random.split(key, 8)
    names = ["wq", "wk", "wv", "wo"]
    params = {}
    for i, n in enumerate(names):
        # Stored already transposed: (D_in, D_out), so the math is x @ W + b.
        params[n] = jax.random.uniform(keys[2 * i], (D, D), jnp.float32,
                                       -bound, bound)
        params["b" + n[1]] = jax.random.uniform(keys[2 * i + 1], (1, D),
                                                jnp.float32, -bound, bound)
    return params


def reference_forward(x, params, heads):
    """Pure-JAX f32 reference mirroring the PyTorch forward."""
    B, S, D = x.shape
    dh = D // heads
    q = x @ params["wq"] + params["bq"]
    k = x @ params["wk"] + params["bk"]
    v = x @ params["wv"] + params["bv"]

    def split(t):
        return t.reshape(B, S, heads, dh).transpose(0, 2, 1, 3)  # (B,H,S,dh)

    q, k, v = split(q), split(k), split(v)
    score = jnp.einsum("bhsd,bhtd->bhst", q, k) / math.sqrt(dh)
    p = jax.nn.softmax(score.astype(jnp.float32), axis=-1).astype(score.dtype)
    out = jnp.einsum("bhst,bhtd->bhsd", p, v)
    out = out.transpose(0, 2, 1, 3).reshape(B, S, D)
    return out @ params["wo"] + params["bo"]


if __name__ == "__main__":
    B, S, D, HEADS = 2, 8, 32, 4

    key = jax.random.PRNGKey(0)
    kx, kp = jax.random.split(key)
    x = jax.random.normal(kx, (B, S, D), jnp.float32)
    params = init_params(kp, D)

    out = attention_forward(x, params, HEADS)
    out = jax.block_until_ready(out)

    ref = reference_forward(x, params, HEADS)
    assert out.shape == (B, S, D)
    # bf16 MXU operands (f32 accumulation) + approx softmax reciprocal give a
    # ~1e-2 absolute deviation from the pure-f32 reference at these magnitudes.
    err = float(jnp.max(jnp.abs(out - ref)))
    assert jnp.allclose(out, ref, atol=3e-2, rtol=3e-2), f"max abs err {err}"

    print("KERNEL_OK")
</pallas_src>

<mosaic_0001>
module attributes {stable_mosaic.version = 11 : i64} {
  func.func @kernel(%arg0: i32, %arg1: i32, %arg2: memref<1x8x128xbf16, #tpu.memory_space<vmem>>, %arg3: memref<128x32xbf16, #tpu.memory_space<vmem>>, %arg4: memref<1x32xf32, #tpu.memory_space<vmem>>, %arg5: memref<128x32xbf16, #tpu.memory_space<vmem>>, %arg6: memref<1x32xf32, #tpu.memory_space<vmem>>, %arg7: memref<128x32xbf16, #tpu.memory_space<vmem>>, %arg8: memref<1x32xf32, #tpu.memory_space<vmem>>, %arg9: memref<32x128xbf16, #tpu.memory_space<vmem>>, %arg10: memref<1x128xf32, #tpu.memory_space<vmem>>, %arg11: memref<1x8x128xf32, #tpu.memory_space<vmem>>) attributes {dimension_semantics = [#tpu.dimension_semantics<parallel>, #tpu.dimension_semantics<parallel>], iteration_bounds = array<i64: 2, 1>, scalar_prefetch = 0 : i64, scratch_operands = 0 : i64, tpu.core_type = #tpu.core_type<tc>, window_params = [{transform_indices = @transform_0, window_bounds = array<i64: 1, 8, 128>}, {pipeline_mode = #tpu.pipeline_mode<synchronous>, transform_indices = @transform_1, window_bounds = array<i64: 128, 32>}, {pipeline_mode = #tpu.pipeline_mode<synchronous>, transform_indices = @transform_2, window_bounds = array<i64: 1, 32>}, {pipeline_mode = #tpu.pipeline_mode<synchronous>, transform_indices = @transform_3, window_bounds = array<i64: 128, 32>}, {pipeline_mode = #tpu.pipeline_mode<synchronous>, transform_indices = @transform_4, window_bounds = array<i64: 1, 32>}, {pipeline_mode = #tpu.pipeline_mode<synchronous>, transform_indices = @transform_5, window_bounds = array<i64: 128, 32>}, {pipeline_mode = #tpu.pipeline_mode<synchronous>, transform_indices = @transform_6, window_bounds = array<i64: 1, 32>}, {pipeline_mode = #tpu.pipeline_mode<synchronous>, transform_indices = @transform_7, window_bounds = array<i64: 32, 128>}, {pipeline_mode = #tpu.pipeline_mode<synchronous>, transform_indices = @transform_8, window_bounds = array<i64: 1, 128>}, {transform_indices = @transform_9, window_bounds = array<i64: 1, 8, 128>}]} {
    %c0 = arith.constant 0 : index
    %c0_0 = arith.constant 0 : index
    %c0_1 = arith.constant 0 : index
    %0 = vector.load %arg2[%c0, %c0_0, %c0_1] : memref<1x8x128xbf16, #tpu.memory_space<vmem>>, vector<1x8x128xbf16>
    %1 = vector.shape_cast %0 : vector<1x8x128xbf16> to vector<8x128xbf16>
    %c8_i32 = arith.constant 8 : i32
    %2 = arith.muli %arg1, %c8_i32 : i32
    %3 = tpu.assume_multiple %2, 8 : i32
    %c0_2 = arith.constant 0 : index
    %4 = arith.index_cast %3 : i32 to index
    %c0_3 = arith.constant 0 : index
    %5 = vector.load %arg2[%c0_2, %4, %c0_3] : memref<1x8x128xbf16, #tpu.memory_space<vmem>>, vector<1x8x128xbf16>
    %6 = vector.shape_cast %5 : vector<1x8x128xbf16> to vector<8x128xbf16>
    %c0_4 = arith.constant 0 : index
    %c0_5 = arith.constant 0 : index
    %7 = vector.load %arg3[%c0_4, %c0_5] : memref<128x32xbf16, #tpu.memory_space<vmem>>, vector<128x32xbf16>
    %cst = arith.constant dense<0.000000e+00> : vector<8x32xf32>
    %8 = tpu.matmul %6, %7, %cst {dimension_numbers = #tpu.dot_dimension_numbers<[1], [0], [0], [1], [0, 0, 1, 1], [], []>} : vector<8x128xbf16>, vector<128x32xbf16>, vector<8x32xf32> -> vector<8x32xf32>
    %c0_6 = arith.constant 0 : index
    %c0_7 = arith.constant 0 : index
    %9 = vector.load %arg4[%c0_6, %c0_7] : memref<1x32xf32, #tpu.memory_space<vmem>>, vector<1x32xf32>
    %10 = vector.broadcast %9 : vector<1x32xf32> to vector<8x32xf32>
    %11 = arith.addf %8, %10 : vector<8x32xf32>
    %c0_8 = arith.constant 0 : index
    %c0_9 = arith.constant 0 : index
    %12 = vector.load %arg5[%c0_8, %c0_9] : memref<128x32xbf16, #tpu.memory_space<vmem>>, vector<128x32xbf16>
    %cst_10 = arith.constant dense<0.000000e+00> : vector<8x32xf32>
    %13 = tpu.matmul %1, %12, %cst_10 {dimension_numbers = #tpu.dot_dimension_numbers<[1], [0], [0], [1], [0, 0, 1, 1], [], []>} : vector<8x128xbf16>, vector<128x32xbf16>, vector<8x32xf32> -> vector<8x32xf32>
    %c0_11 = arith.constant 0 : index
    %c0_12 = arith.constant 0 : index
    %14 = vector.load %arg6[%c0_11, %c0_12] : memref<1x32xf32, #tpu.memory_space<vmem>>, vector<1x32xf32>
    %15 = vector.broadcast %14 : vector<1x32xf32> to vector<8x32xf32>
    %16 = arith.addf %13, %15 : vector<8x32xf32>
    %c0_13 = arith.constant 0 : index
    %c0_14 = arith.constant 0 : index
    %17 = vector.load %arg7[%c0_13, %c0_14] : memref<128x32xbf16, #tpu.memory_space<vmem>>, vector<128x32xbf16>
    %cst_15 = arith.constant dense<0.000000e+00> : vector<8x32xf32>
    %18 = tpu.matmul %1, %17, %cst_15 {dimension_numbers = #tpu.dot_dimension_numbers<[1], [0], [0], [1], [0, 0, 1, 1], [], []>} : vector<8x128xbf16>, vector<128x32xbf16>, vector<8x32xf32> -> vector<8x32xf32>
    %c0_16 = arith.constant 0 : index
    %c0_17 = arith.constant 0 : index
    %19 = vector.load %arg8[%c0_16, %c0_17] : memref<1x32xf32, #tpu.memory_space<vmem>>, vector<1x32xf32>
    %20 = vector.broadcast %19 : vector<1x32xf32> to vector<8x32xf32>
    %21 = arith.addf %18, %20 : vector<8x32xf32>
    %22 = arith.truncf %11 : vector<8x32xf32> to vector<8x32xbf16>
    %23 = arith.truncf %16 : vector<8x32xf32> to vector<8x32xbf16>
    %24 = arith.truncf %21 : vector<8x32xf32> to vector<8x32xbf16>
    %cst_18 = arith.constant 0.000000e+00 : f32
    %25 = vector.broadcast %cst_18 : f32 to vector<8x128xf32>
    %26 = vector.extract_strided_slice %22 {offsets = [0, 0], sizes = [8, 8], strides = [1, 1]} : vector<8x32xbf16> to vector<8x8xbf16>
    %27 = vector.extract_strided_slice %23 {offsets = [0, 0], sizes = [8, 8], strides = [1, 1]} : vector<8x32xbf16> to vector<8x8xbf16>
    %28 = vector.extract_strided_slice %24 {offsets = [0, 0], sizes = [8, 8], strides = [1, 1]} : vector<8x32xbf16> to vector<8x8xbf16>
    %cst_19 = arith.constant dense<0.000000e+00> : vector<8x8xf32>
    %29 = tpu.matmul %26, %27, %cst_19 {dimension_numbers = #tpu.dot_dimension_numbers<[1], [1], [0], [0], [0, 0, 1, 0], [], []>} : vector<8x8xbf16>, vector<8x8xbf16>, vector<8x8xf32> -> vector<8x8xf32>
    %cst_20 = arith.constant dense<0xFF800000> : vector<8xf32>
    %30 = vector.multi_reduction <maximumf>, %29, %cst_20 [1] : vector<8x8xf32> to vector<8xf32>
    %31 = vector.shape_cast %30 : vector<8xf32> to vector<8x1xf32>
    %32 = vector.broadcast %31 : vector<8x1xf32> to vector<8x8xf32>
    %33 = arith.subf %29, %32 : vector<8x8xf32>
    %34 = math.exp %33 : vector<8x8xf32>
    %cst_21 = arith.constant dense<0.000000e+00> : vector<8xf32>
    %35 = vector.multi_reduction <add>, %34, %cst_21 [1] : vector<8x8xf32> to vector<8xf32>
    %36 = vector.shape_cast %35 : vector<8xf32> to vector<8x1xf32>
    %37 = arith.truncf %34 : vector<8x8xf32> to vector<8x8xbf16>
    %cst_22 = arith.constant dense<0.000000e+00> : vector<8x8xf32>
    %38 = tpu.matmul %37, %28, %cst_22 {dimension_numbers = #tpu.dot_dimension_numbers<[1], [0], [0], [1], [0, 0, 1, 1], [], []>} : vector<8x8xbf16>, vector<8x8xbf16>, vector<8x8xf32> -> vector<8x8xf32>
    %39 = tpu.reciprocal %36 {approx = true} : vector<8x1xf32> -> vector<8x1xf32>
    %40 = vector.broadcast %39 : vector<8x1xf32> to vector<8x8xf32>
    %41 = arith.mulf %38, %40 : vector<8x8xf32>
    %42 = arith.truncf %41 : vector<8x8xf32> to vector<8x8xbf16>
    %c0_23 = arith.constant 0 : index
    %c0_24 = arith.constant 0 : index
    %43 = vector.load %arg9[%c0_23, %c0_24] : memref<32x128xbf16, #tpu.memory_space<vmem>>, vector<8x128xbf16>
    %cst_25 = arith.constant dense<0.000000e+00> : vector<8x128xf32>
    %44 = tpu.matmul %42, %43, %cst_25 {dimension_numbers = #tpu.dot_dimension_numbers<[1], [0], [0], [1], [0, 0, 1, 1], [], []>} : vector<8x8xbf16>, vector<8x128xbf16>, vector<8x128xf32> -> vector<8x128xf32>
    %45 = arith.addf %25, %44 : vector<8x128xf32>
    %46 = vector.extract_strided_slice %22 {offsets = [0, 8], sizes = [8, 8], strides = [1, 1]} : vector<8x32xbf16> to vector<8x8xbf16>
    %47 = vector.extract_strided_slice %23 {offsets = [0, 8], sizes = [8, 8], strides = [1, 1]} : vector<8x32xbf16> to vector<8x8xbf16>
    %48 = vector.extract_strided_slice %24 {offsets = [0, 8], sizes = [8, 8], strides = [1, 1]} : vector<8x32xbf16> to vector<8x8xbf16>
    %cst_26 = arith.constant dense<0.000000e+00> : vector<8x8xf32>
    %49 = tpu.matmul %46, %47, %cst_26 {dimension_numbers = #tpu.dot_dimension_numbers<[1], [1], [0], [0], [0, 0, 1, 0], [], []>} : vector<8x8xbf16>, vector<8x8xbf16>, vector<8x8xf32> -> vector<8x8xf32>
    %cst_27 = arith.constant dense<0xFF800000> : vector<8xf32>
    %50 = vector.multi_reduction <maximumf>, %49, %cst_27 [1] : vector<8x8xf32> to vector<8xf32>
    %51 = vector.shape_cast %50 : vector<8xf32> to vector<8x1xf32>
    %52 = vector.broadcast %51 : vector<8x1xf32> to vector<8x8xf32>
    %53 = arith.subf %49, %52 : vector<8x8xf32>
    %54 = math.exp %53 : vector<8x8xf32>
    %cst_28 = arith.constant dense<0.000000e+00> : vector<8xf32>
    %55 = vector.multi_reduction <add>, %54, %cst_28 [1] : vector<8x8xf32> to vector<8xf32>
    %56 = vector.shape_cast %55 : vector<8xf32> to vector<8x1xf32>
    %57 = arith.truncf %54 : vector<8x8xf32> to vector<8x8xbf16>
    %cst_29 = arith.constant dense<0.000000e+00> : vector<8x8xf32>
    %58 = tpu.matmul %57, %48, %cst_29 {dimension_numbers = #tpu.dot_dimension_numbers<[1], [0], [0], [1], [0, 0, 1, 1], [], []>} : vector<8x8xbf16>, vector<8x8xbf16>, vector<8x8xf32> -> vector<8x8xf32>
    %59 = tpu.reciprocal %56 {approx = true} : vector<8x1xf32> -> vector<8x1xf32>
    %60 = vector.broadcast %59 : vector<8x1xf32> to vector<8x8xf32>
    %61 = arith.mulf %58, %60 : vector<8x8xf32>
    %62 = arith.truncf %61 : vector<8x8xf32> to vector<8x8xbf16>
    %c8 = arith.constant 8 : index
    %c0_30 = arith.constant 0 : index
    %63 = vector.load %arg9[%c8, %c0_30] : memref<32x128xbf16, #tpu.memory_space<vmem>>, vector<8x128xbf16>
    %cst_31 = arith.constant dense<0.000000e+00> : vector<8x128xf32>
    %64 = tpu.matmul %62, %63, %cst_31 {dimension_numbers = #tpu.dot_dimension_numbers<[1], [0], [0], [1], [0, 0, 1, 1], [], []>} : vector<8x8xbf16>, vector<8x128xbf16>, vector<8x128xf32> -> vector<8x128xf32>
    %65 = arith.addf %45, %64 : vector<8x128xf32>
    %66 = vector.extract_strided_slice %22 {offsets = [0, 16], sizes = [8, 8], strides = [1, 1]} : vector<8x32xbf16> to vector<8x8xbf16>
    %67 = vector.extract_strided_slice %23 {offsets = [0, 16], sizes = [8, 8], strides = [1, 1]} : vector<8x32xbf16> to vector<8x8xbf16>
    %68 = vector.extract_strided_slice %24 {offsets = [0, 16], sizes = [8, 8], strides = [1, 1]} : vector<8x32xbf16> to vector<8x8xbf16>
    %cst_32 = arith.constant dense<0.000000e+00> : vector<8x8xf32>
    %69 = tpu.matmul %66, %67, %cst_32 {dimension_numbers = #tpu.dot_dimension_numbers<[1], [1], [0], [0], [0, 0, 1, 0], [], []>} : vector<8x8xbf16>, vector<8x8xbf16>, vector<8x8xf32> -> vector<8x8xf32>
    %cst_33 = arith.constant dense<0xFF800000> : vector<8xf32>
    %70 = vector.multi_reduction <maximumf>, %69, %cst_33 [1] : vector<8x8xf32> to vector<8xf32>
    %71 = vector.shape_cast %70 : vector<8xf32> to vector<8x1xf32>
    %72 = vector.broadcast %71 : vector<8x1xf32> to vector<8x8xf32>
    %73 = arith.subf %69, %72 : vector<8x8xf32>
    %74 = math.exp %73 : vector<8x8xf32>
    %cst_34 = arith.constant dense<0.000000e+00> : vector<8xf32>
    %75 = vector.multi_reduction <add>, %74, %cst_34 [1] : vector<8x8xf32> to vector<8xf32>
    %76 = vector.shape_cast %75 : vector<8xf32> to vector<8x1xf32>
    %77 = arith.truncf %74 : vector<8x8xf32> to vector<8x8xbf16>
    %cst_35 = arith.constant dense<0.000000e+00> : vector<8x8xf32>
    %78 = tpu.matmul %77, %68, %cst_35 {dimension_numbers = #tpu.dot_dimension_numbers<[1], [0], [0], [1], [0, 0, 1, 1], [], []>} : vector<8x8xbf16>, vector<8x8xbf16>, vector<8x8xf32> -> vector<8x8xf32>
    %79 = tpu.reciprocal %76 {approx = true} : vector<8x1xf32> -> vector<8x1xf32>
    %80 = vector.broadcast %79 : vector<8x1xf32> to vector<8x8xf32>
    %81 = arith.mulf %78, %80 : vector<8x8xf32>
    %82 = arith.truncf %81 : vector<8x8xf32> to vector<8x8xbf16>
    %c16 = arith.constant 16 : index
    %c0_36 = arith.constant 0 : index
    %83 = vector.load %arg9[%c16, %c0_36] : memref<32x128xbf16, #tpu.memory_space<vmem>>, vector<8x128xbf16>
    %cst_37 = arith.constant dense<0.000000e+00> : vector<8x128xf32>
    %84 = tpu.matmul %82, %83, %cst_37 {dimension_numbers = #tpu.dot_dimension_numbers<[1], [0], [0], [1], [0, 0, 1, 1], [], []>} : vector<8x8xbf16>, vector<8x128xbf16>, vector<8x128xf32> -> vector<8x128xf32>
    %85 = arith.addf %65, %84 : vector<8x128xf32>
    %86 = vector.extract_strided_slice %22 {offsets = [0, 24], sizes = [8, 8], strides = [1, 1]} : vector<8x32xbf16> to vector<8x8xbf16>
    %87 = vector.extract_strided_slice %23 {offsets = [0, 24], sizes = [8, 8], strides = [1, 1]} : vector<8x32xbf16> to vector<8x8xbf16>
    %88 = vector.extract_strided_slice %24 {offsets = [0, 24], sizes = [8, 8], strides = [1, 1]} : vector<8x32xbf16> to vector<8x8xbf16>
    %cst_38 = arith.constant dense<0.000000e+00> : vector<8x8xf32>
    %89 = tpu.matmul %86, %87, %cst_38 {dimension_numbers = #tpu.dot_dimension_numbers<[1], [1], [0], [0], [0, 0, 1, 0], [], []>} : vector<8x8xbf16>, vector<8x8xbf16>, vector<8x8xf32> -> vector<8x8xf32>
    %cst_39 = arith.constant dense<0xFF800000> : vector<8xf32>
    %90 = vector.multi_reduction <maximumf>, %89, %cst_39 [1] : vector<8x8xf32> to vector<8xf32>
    %91 = vector.shape_cast %90 : vector<8xf32> to vector<8x1xf32>
    %92 = vector.broadcast %91 : vector<8x1xf32> to vector<8x8xf32>
    %93 = arith.subf %89, %92 : vector<8x8xf32>
    %94 = math.exp %93 : vector<8x8xf32>
    %cst_40 = arith.constant dense<0.000000e+00> : vector<8xf32>
    %95 = vector.multi_reduction <add>, %94, %cst_40 [1] : vector<8x8xf32> to vector<8xf32>
    %96 = vector.shape_cast %95 : vector<8xf32> to vector<8x1xf32>
    %97 = arith.truncf %94 : vector<8x8xf32> to vector<8x8xbf16>
    %cst_41 = arith.constant dense<0.000000e+00> : vector<8x8xf32>
    %98 = tpu.matmul %97, %88, %cst_41 {dimension_numbers = #tpu.dot_dimension_numbers<[1], [0], [0], [1], [0, 0, 1, 1], [], []>} : vector<8x8xbf16>, vector<8x8xbf16>, vector<8x8xf32> -> vector<8x8xf32>
    %99 = tpu.reciprocal %96 {approx = true} : vector<8x1xf32> -> vector<8x1xf32>
    %100 = vector.broadcast %99 : vector<8x1xf32> to vector<8x8xf32>
    %101 = arith.mulf %98, %100 : vector<8x8xf32>
    %102 = arith.truncf %101 : vector<8x8xf32> to vector<8x8xbf16>
    %c24 = arith.constant 24 : index
    %c0_42 = arith.constant 0 : index
    %103 = vector.load %arg9[%c24, %c0_42] : memref<32x128xbf16, #tpu.memory_space<vmem>>, vector<8x128xbf16>
    %cst_43 = arith.constant dense<0.000000e+00> : vector<8x128xf32>
    %104 = tpu.matmul %102, %103, %cst_43 {dimension_numbers = #tpu.dot_dimension_numbers<[1], [0], [0], [1], [0, 0, 1, 1], [], []>} : vector<8x8xbf16>, vector<8x128xbf16>, vector<8x128xf32> -> vector<8x128xf32>
    %105 = arith.addf %85, %104 : vector<8x128xf32>
    %c0_44 = arith.constant 0 : index
    %c0_45 = arith.constant 0 : index
    %106 = vector.load %arg10[%c0_44, %c0_45] : memref<1x128xf32, #tpu.memory_space<vmem>>, vector<1x128xf32>
    %107 = vector.broadcast %106 : vector<1x128xf32> to vector<8x128xf32>
    %108 = arith.addf %105, %107 : vector<8x128xf32>
    %c0_46 = arith.constant 0 : index
    %c0_47 = arith.constant 0 : index
    %c0_48 = arith.constant 0 : index
    %109 = vector.load %arg11[%c0_46, %c0_47, %c0_48] : memref<1x8x128xf32, #tpu.memory_space<vmem>>, vector<1x8x128xf32>
    %110 = vector.shape_cast %109 : vector<1x8x128xf32> to vector<8x128xf32>
    %111 = vector.shape_cast %108 : vector<8x128xf32> to vector<1x8x128xf32>
    tpu.vector_store %arg11[%c0_46, %c0_47, %c0_48], %111 {strides = array<i32>} : memref<1x8x128xf32, #tpu.memory_space<vmem>>, vector<1x8x128xf32>,
    return
  }
  func.func @transform_0(%arg0: i32, %arg1: i32) -> (i32, i32, i32) {
    %c0_i32 = arith.constant 0 : i32
    %c0_i32_0 = arith.constant 0 : i32
    %c0_i32_1 = arith.constant 0 : i32
    return %arg0, %c0_i32, %c0_i32_0 : i32, i32, i32
  }
  func.func @transform_1(%arg0: i32, %arg1: i32) -> (i32, i32) {
    %c0_i32 = arith.constant 0 : i32
    %c0_i32_0 = arith.constant 0 : i32
    %c0_i32_1 = arith.constant 0 : i32
    return %c0_i32, %c0_i32_0 : i32, i32
  }
  func.func @transform_2(%arg0: i32, %arg1: i32) -> (i32, i32) {
    %c0_i32 = arith.constant 0 : i32
    %c0_i32_0 = arith.constant 0 : i32
    %c0_i32_1 = arith.constant 0 : i32
    return %c0_i32, %c0_i32_0 : i32, i32
  }
  func.func @transform_3(%arg0: i32, %arg1: i32) -> (i32, i32) {
    %c0_i32 = arith.constant 0 : i32
    %c0_i32_0 = arith.constant 0 : i32
    %c0_i32_1 = arith.constant 0 : i32
    return %c0_i32, %c0_i32_0 : i32, i32
  }
  func.func @transform_4(%arg0: i32, %arg1: i32) -> (i32, i32) {
    %c0_i32 = arith.constant 0 : i32
    %c0_i32_0 = arith.constant 0 : i32
    %c0_i32_1 = arith.constant 0 : i32
    return %c0_i32, %c0_i32_0 : i32, i32
  }
  func.func @transform_5(%arg0: i32, %arg1: i32) -> (i32, i32) {
    %c0_i32 = arith.constant 0 : i32
    %c0_i32_0 = arith.constant 0 : i32
    %c0_i32_1 = arith.constant 0 : i32
    return %c0_i32, %c0_i32_0 : i32, i32
  }
  func.func @transform_6(%arg0: i32, %arg1: i32) -> (i32, i32) {
    %c0_i32 = arith.constant 0 : i32
    %c0_i32_0 = arith.constant 0 : i32
    %c0_i32_1 = arith.constant 0 : i32
    return %c0_i32, %c0_i32_0 : i32, i32
  }
  func.func @transform_7(%arg0: i32, %arg1: i32) -> (i32, i32) {
    %c0_i32 = arith.constant 0 : i32
    %c0_i32_0 = arith.constant 0 : i32
    %c0_i32_1 = arith.constant 0 : i32
    return %c0_i32, %c0_i32_0 : i32, i32
  }
  func.func @transform_8(%arg0: i32, %arg1: i32) -> (i32, i32) {
    %c0_i32 = arith.constant 0 : i32
    %c0_i32_0 = arith.constant 0 : i32
    %c0_i32_1 = arith.constant 0 : i32
    return %c0_i32, %c0_i32_0 : i32, i32
  }
  func.func @transform_9(%arg0: i32, %arg1: i32) -> (i32, i32, i32) {
    %c0_i32 = arith.constant 0 : i32
    %c0_i32_0 = arith.constant 0 : i32
    return %arg0, %arg1, %c0_i32 : i32, i32, i32
  }
}

</mosaic_0001>

<llo_original>
// kernel: tpu_custom_call.1
$region0: #{tpu_custom_call.1}
  #allocation0 [shape = 'u32[]', space=smem, size = 0x4, offset = 0x4, fixed_abs, tag = 'smem constant byte address 0x4 - core index']
  #allocation1 [shape = 'u32[144,128]{1,0:T(1,128)}', space=vmem, size = 0x12000, scoped, tag = 'internal scratch']
  %s0 = inlined_call_operand.vmem [shape: bf16[2,8,128], index: 0, kind: input, shape index: {}]
  %s1 = inlined_call_operand.vmem [shape: bf16[128,32], index: 1, kind: input, shape index: {}]
  %s2 = inlined_call_operand.vmem [shape: f32[1,32], index: 2, kind: input, shape index: {}]
  %s3 = inlined_call_operand.vmem [shape: bf16[128,32], index: 3, kind: input, shape index: {}]
  %s4 = inlined_call_operand.vmem [shape: f32[1,32], index: 4, kind: input, shape index: {}]
  %s5 = inlined_call_operand.vmem [shape: bf16[128,32], index: 5, kind: input, shape index: {}]
  %s6 = inlined_call_operand.vmem [shape: f32[1,32], index: 6, kind: input, shape index: {}]
  %s7 = inlined_call_operand.vmem [shape: bf16[32,128], index: 7, kind: input, shape index: {}]
  %s8 = inlined_call_operand.vmem [shape: f32[1,128], index: 8, kind: input, shape index: {}]
  %s9 = inlined_call_operand.hbm [shape: f32[2,8,128], index: 9, kind: output, shape index: {}]
  %s10 = sld [smem:[#allocation0]]
  $region69: #{tpu_custom_call.1} parent=0
    _
  %s12 = ssub.s32 1, %s10
  %s13 = scalar_select 0, %s12, %s10
  $region1: #{tpu_custom_call.1} parent=0
    #allocation2 [shape = 'u8[8192]{0}', space=vmem, size = 0x2000, scoped, tag = 'output window, operand 0']
    #allocation3 [shape = 's32[2]{0}', space=sflag, size = 0x8, scoped, tag = 'scoped memory for tpu_custom_call.1']
    %14 = vsyncpa [#allocation3], 0
    %s15 = scalar_lea.sflag [#allocation3], 1
    %16 = vsyncpa %s15, 0
    loop: start=0, step=1, limit=4
    $region2: #{tpu_custom_call.1} parent=1 // loop_pre_header
      _
    $region3: #{tpu_custom_call.1} parent=1 // loop_header
      %s18 = sphi 0, %s22
      %p19 = scmp.ge.s32.totalorder %s18, 4
      %s25 = sphi 0, %s37
      %s26 = sphi 0, %s33
      %s27 = sphi 0, %s25
      %s28 = sphi 0, %s26
      %s29 = sphi 0, %s27
      %s30 = sphi 0, %s28
      %s40 = sphi 0, %s42
      %s43 = sphi 0, %s40
      %s44 = sphi 0, %s43
      %s60 = sphi 0, %s44
      %s64 = sphi 0, %s64
      %s66 = sphi 0, %s64
      %s67 = sphi 0, %s66
      %s81 = sphi 0, %s67
      %s85 = sphi 0, %s85
      %s87 = sphi 0, %s85
      %s88 = sphi 0, %s87
      %s102 = sphi 0, %s88
      %s106 = sphi 0, %s106
      %s108 = sphi 0, %s106
      %s109 = sphi 0, %s108
      %s123 = sphi 0, %s109
      %s127 = sphi 0, %s127
      %s129 = sphi 0, %s127
      %s130 = sphi 0, %s129
      %s144 = sphi 0, %s130
      %s148 = sphi 0, %s148
      %s150 = sphi 0, %s148
      %s151 = sphi 0, %s150
      %s165 = sphi 0, %s151
      %s169 = sphi 0, %s169
      %s171 = sphi 0, %s169
      %s172 = sphi 0, %s171
      %s186 = sphi 0, %s172
      %s190 = sphi 0, %s190
      %s192 = sphi 0, %s190
      %s193 = sphi 0, %s192
      %s207 = sphi 0, %s193
      %s211 = sphi 0, %s211
      %s213 = sphi 0, %s211
      %s214 = sphi 0, %s213
      %s228 = sphi 0, %s214
      %s236 = sphi 0, %s238
      %s239 = sphi 0, %s236
      %s240 = sphi 0, %s239
      %s256 = sphi 0, %s240
    $region4: #{tpu_custom_call.1} parent=1 // loop_header_branch
      %21 = sbr.rel (%p19) target = $region8
    $region5: #{tpu_custom_call.1} parent=1 // loop_body
      %s23 = ssub.s32 %s18, 1
      %s24 = ssub.s32 %s18, 2
      %s31 = sadd.s32 1, %s26
      %p32 = scmp.ge.s32.totalorder %s31, 1
      %s33 = scalar_select %p32, 0, %s31
      %s34 = sadd.s32 1, %s25
      %s35 = scalar_select %p32, %s34, %s25
      %p36 = scmp.ge.s32.totalorder %s35, 2
      %s37 = scalar_select %p36, 0, %s35
      %s38 = ssub.s32 %s25, %s37
      %p39 = scmp.eq.s32.totalorder %s38, 0
      %s41 = sadd.s32 %s40, 1
      %s42 = scalar_select %p39, %s40, %s41
      %p45 = pneg %p39
      %p46 = scmp.eq.s32.totalorder %s18, 1
      %p47 = por %p45, %p46
      %p48 = scmp.ne.s32.totalorder %s40, %s43
      %p49 = scmp.eq.s32.totalorder %s18, 0
      %p50 = por %p48, %p49
      %p51 = scmp.ne.s32.totalorder %s40, %s43
      %p52 = scmp.eq.s32.totalorder %s23, 1
      %p53 = por %p51, %p52
      %p54 = scmp.ne.s32.totalorder %s43, %s44
      %p55 = scmp.eq.s32.totalorder %s23, 0
      %p56 = por %p54, %p55
      %p57 = scmp.ne.s32.totalorder %s43, %s44
      %p58 = scmp.eq.s32.totalorder %s24, 1
      %p59 = por %p57, %p58
      %p61 = scmp.ne.s32.totalorder %s44, %s60
      %p62 = scmp.eq.s32.totalorder %s24, 0
      %p63 = por %p61, %p62
      %s65 = sadd.s32 %s64, 1
      %p68 = scmp.eq.s32.totalorder %s18, 1
      %p69 = scmp.ne.s32.totalorder %s64, %s66
      %p70 = scmp.eq.s32.totalorder %s18, 0
      %p71 = por %p69, %p70
      %p72 = scmp.ne.s32.totalorder %s64, %s66
      %p73 = scmp.eq.s32.totalorder %s23, 1
      %p74 = por %p72, %p73
      %p75 = scmp.ne.s32.totalorder %s66, %s67
      %p76 = scmp.eq.s32.totalorder %s23, 0
      %p77 = por %p75, %p76
      %p78 = scmp.ne.s32.totalorder %s66, %s67
      %p79 = scmp.eq.s32.totalorder %s24, 1
      %p80 = por %p78, %p79
      %p82 = scmp.ne.s32.totalorder %s67, %s81
      %p83 = scmp.eq.s32.totalorder %s24, 0
      %p84 = por %p82, %p83
      %s86 = sadd.s32 %s85, 1
      %p89 = scmp.eq.s32.totalorder %s18, 1
      %p90 = scmp.ne.s32.totalorder %s85, %s87
      %p91 = scmp.eq.s32.totalorder %s18, 0
      %p92 = por %p90, %p91
      %p93 = scmp.ne.s32.totalorder %s85, %s87
      %p94 = scmp.eq.s32.totalorder %s23, 1
      %p95 = por %p93, %p94
      %p96 = scmp.ne.s32.totalorder %s87, %s88
      %p97 = scmp.eq.s32.totalorder %s23, 0
      %p98 = por %p96, %p97
      %p99 = scmp.ne.s32.totalorder %s87, %s88
      %p100 = scmp.eq.s32.totalorder %s24, 1
      %p101 = por %p99, %p100
      %p103 = scmp.ne.s32.totalorder %s88, %s102
      %p104 = scmp.eq.s32.totalorder %s24, 0
      %p105 = por %p103, %p104
      %s107 = sadd.s32 %s106, 1
      %p110 = scmp.eq.s32.totalorder %s18, 1
      %p111 = scmp.ne.s32.totalorder %s106, %s108
      %p112 = scmp.eq.s32.totalorder %s18, 0
      %p113 = por %p111, %p112
      %p114 = scmp.ne.s32.totalorder %s106, %s108
      %p115 = scmp.eq.s32.totalorder %s23, 1
      %p116 = por %p114, %p115
      %p117 = scmp.ne.s32.totalorder %s108, %s109
      %p118 = scmp.eq.s32.totalorder %s23, 0
      %p119 = por %p117, %p118
      %p120 = scmp.ne.s32.totalorder %s108, %s109
      %p121 = scmp.eq.s32.totalorder %s24, 1
      %p122 = por %p120, %p121
      %p124 = scmp.ne.s32.totalorder %s109, %s123
      %p125 = scmp.eq.s32.totalorder %s24, 0
      %p126 = por %p124, %p125
      %s128 = sadd.s32 %s127, 1
      %p131 = scmp.eq.s32.totalorder %s18, 1
      %p132 = scmp.ne.s32.totalorder %s127, %s129
      %p133 = scmp.eq.s32.totalorder %s18, 0
      %p134 = por %p132, %p133
      %p135 = scmp.ne.s32.totalorder %s127, %s129
      %p136 = scmp.eq.s32.totalorder %s23, 1
      %p137 = por %p135, %p136
      %p138 = scmp.ne.s32.totalorder %s129, %s130
      %p139 = scmp.eq.s32.totalorder %s23, 0
      %p140 = por %p138, %p139
      %p141 = scmp.ne.s32.totalorder %s129, %s130
      %p142 = scmp.eq.s32.totalorder %s24, 1
      %p143 = por %p141, %p142
      %p145 = scmp.ne.s32.totalorder %s130, %s144
      %p146 = scmp.eq.s32.totalorder %s24, 0
      %p147 = por %p145, %p146
      %s149 = sadd.s32 %s148, 1
      %p152 = scmp.eq.s32.totalorder %s18, 1
      %p153 = scmp.ne.s32.totalorder %s148, %s150
      %p154 = scmp.eq.s32.totalorder %s18, 0
      %p155 = por %p153, %p154
      %p156 = scmp.ne.s32.totalorder %s148, %s150
      %p157 = scmp.eq.s32.totalorder %s23, 1
      %p158 = por %p156, %p157
      %p159 = scmp.ne.s32.totalorder %s150, %s151
      %p160 = scmp.eq.s32.totalorder %s23, 0
      %p161 = por %p159, %p160
      %p162 = scmp.ne.s32.totalorder %s150, %s151
      %p163 = scmp.eq.s32.totalorder %s24, 1
      %p164 = por %p162, %p163
      %p166 = scmp.ne.s32.totalorder %s151, %s165
      %p167 = scmp.eq.s32.totalorder %s24, 0
      %p168 = por %p166, %p167
      %s170 = sadd.s32 %s169, 1
      %p173 = scmp.eq.s32.totalorder %s18, 1
      %p174 = scmp.ne.s32.totalorder %s169, %s171
      %p175 = scmp.eq.s32.totalorder %s18, 0
      %p176 = por %p174, %p175
      %p177 = scmp.ne.s32.totalorder %s169, %s171
      %p178 = scmp.eq.s32.totalorder %s23, 1
      %p179 = por %p177, %p178
      %p180 = scmp.ne.s32.totalorder %s171, %s172
      %p181 = scmp.eq.s32.totalorder %s23, 0
      %p182 = por %p180, %p181
      %p183 = scmp.ne.s32.totalorder %s171, %s172
      %p184 = scmp.eq.s32.totalorder %s24, 1
      %p185 = por %p183, %p184
      %p187 = scmp.ne.s32.totalorder %s172, %s186
      %p188 = scmp.eq.s32.totalorder %s24, 0
      %p189 = por %p187, %p188
      %s191 = sadd.s32 %s190, 1
      %p194 = scmp.eq.s32.totalorder %s18, 1
      %p195 = scmp.ne.s32.totalorder %s190, %s192
      %p196 = scmp.eq.s32.totalorder %s18, 0
      %p197 = por %p195, %p196
      %p198 = scmp.ne.s32.totalorder %s190, %s192
      %p199 = scmp.eq.s32.totalorder %s23, 1
      %p200 = por %p198, %p199
      %p201 = scmp.ne.s32.totalorder %s192, %s193
      %p202 = scmp.eq.s32.totalorder %s23, 0
      %p203 = por %p201, %p202
      %p204 = scmp.ne.s32.totalorder %s192, %s193
      %p205 = scmp.eq.s32.totalorder %s24, 1
      %p206 = por %p204, %p205
      %p208 = scmp.ne.s32.totalorder %s193, %s207
      %p209 = scmp.eq.s32.totalorder %s24, 0
      %p210 = por %p208, %p209
      %s212 = sadd.s32 %s211, 1
      %p215 = scmp.eq.s32.totalorder %s18, 1
      %p216 = scmp.ne.s32.totalorder %s211, %s213
      %p217 = scmp.eq.s32.totalorder %s18, 0
      %p218 = por %p216, %p217
      %p219 = scmp.ne.s32.totalorder %s211, %s213
      %p220 = scmp.eq.s32.totalorder %s23, 1
      %p221 = por %p219, %p220
      %p222 = scmp.ne.s32.totalorder %s213, %s214
      %p223 = scmp.eq.s32.totalorder %s23, 0
      %p224 = por %p222, %p223
      %p225 = scmp.ne.s32.totalorder %s213, %s214
      %p226 = scmp.eq.s32.totalorder %s24, 1
      %p227 = por %p225, %p226
      %p229 = scmp.ne.s32.totalorder %s214, %s228
      %p230 = scmp.eq.s32.totalorder %s24, 0
      %p231 = por %p229, %p230
      %s232 = ssub.s32 %s25, %s37
      %s233 = ssub.s32 %s26, %s33
      %s234 = sor.u32 %s232, %s233
      %p235 = scmp.eq.s32.totalorder %s234, 0
      %s237 = sadd.s32 %s236, 1
      %s238 = scalar_select %p235, %s236, %s237
      %p241 = pneg %p235
      %p242 = scmp.eq.s32.totalorder %s18, 1
      %p243 = por %p241, %p242
      %p244 = scmp.ne.s32.totalorder %s236, %s239
      %p245 = scmp.eq.s32.totalorder %s18, 0
      %p246 = por %p244, %p245
      %p247 = scmp.ne.s32.totalorder %s236, %s239
      %p248 = scmp.eq.s32.totalorder %s23, 1
      %p249 = por %p247, %p248
      %p250 = scmp.ne.s32.totalorder %s239, %s240
      %p251 = scmp.eq.s32.totalorder %s23, 0
      %p252 = por %p250, %p251
      %p253 = scmp.ne.s32.totalorder %s239, %s240
      %p254 = scmp.eq.s32.totalorder %s24, 1
      %p255 = por %p253, %p254
      %p257 = scmp.ne.s32.totalorder %s240, %s256
      %p258 = scmp.eq.s32.totalorder %s24, 0
      %p259 = por %p257, %p258
      %p260 = scmp.le.s32.totalorder 1, %s18
      %p261 = scmp.lt.s32.totalorder %s18, 3
      %p262 = pnand %p260, %p261
      %p263 = pneg %p262
      // Predicated region
      $region9: #{tpu_custom_call.1} parent=5 // pred_check
        _
      $region10: #{tpu_custom_call.1} parent=5 // pred_check_branch
        %265 = sbr.rel (%p262) target = $region12
      $region11: #{tpu_custom_call.1} parent=5 // pred_region
        %s266 = ssub.s32 %s18, 1
        // Predicated region
        $region13: #{tpu_custom_call.1} parent=11 // pred_check
          %p267 = pneg %p77
        $region14: #{tpu_custom_call.1} parent=11 // pred_check_branch
          %269 = sbr.rel (%p267) target = $region16
        $region15: #{tpu_custom_call.1} parent=11 // pred_region
          _
        $region16: #{tpu_custom_call.1} parent=11 // pred_fallthru
          _
        // Predicated region
        $region17: #{tpu_custom_call.1} parent=11 // pred_check
          %p270 = pneg %p98
        $region18: #{tpu_custom_call.1} parent=11 // pred_check_branch
          %272 = sbr.rel (%p270) target = $region20
        $region19: #{tpu_custom_call.1} parent=11 // pred_region
          _
        $region20: #{tpu_custom_call.1} parent=11 // pred_fallthru
          _
        // Predicated region
        $region21: #{tpu_custom_call.1} parent=11 // pred_check
          %p273 = pneg %p119
        $region22: #{tpu_custom_call.1} parent=11 // pred_check_branch
          %275 = sbr.rel (%p273) target = $region24
        $region23: #{tpu_custom_call.1} parent=11 // pred_region
          _
        $region24: #{tpu_custom_call.1} parent=11 // pred_fallthru
          _
        // Predicated region
        $region25: #{tpu_custom_call.1} parent=11 // pred_check
          %p276 = pneg %p140
        $region26: #{tpu_custom_call.1} parent=11 // pred_check_branch
          %278 = sbr.rel (%p276) target = $region28
        $region27: #{tpu_custom_call.1} parent=11 // pred_region
          _
        $region28: #{tpu_custom_call.1} parent=11 // pred_fallthru
          _
        // Predicated region
        $region29: #{tpu_custom_call.1} parent=11 // pred_check
          %p279 = pneg %p161
        $region30: #{tpu_custom_call.1} parent=11 // pred_check_branch
          %281 = sbr.rel (%p279) target = $region32
        $region31: #{tpu_custom_call.1} parent=11 // pred_region
          _
        $region32: #{tpu_custom_call.1} parent=11 // pred_fallthru
          _
        // Predicated region
        $region33: #{tpu_custom_call.1} parent=11 // pred_check
          %p282 = pneg %p182
        $region34: #{tpu_custom_call.1} parent=11 // pred_check_branch
          %284 = sbr.rel (%p282) target = $region36
        $region35: #{tpu_custom_call.1} parent=11 // pred_region
          _
        $region36: #{tpu_custom_call.1} parent=11 // pred_fallthru
          _
        // Predicated region
        $region37: #{tpu_custom_call.1} parent=11 // pred_check
          %p285 = pneg %p203
        $region38: #{tpu_custom_call.1} parent=11 // pred_check_branch
          %287 = sbr.rel (%p285) target = $region40
        $region39: #{tpu_custom_call.1} parent=11 // pred_region
          _
        $region40: #{tpu_custom_call.1} parent=11 // pred_fallthru
          _
        // Predicated region
        $region41: #{tpu_custom_call.1} parent=11 // pred_check
          %p288 = pneg %p224
        $region42: #{tpu_custom_call.1} parent=11 // pred_check_branch
          %290 = sbr.rel (%p288) target = $region44
        $region43: #{tpu_custom_call.1} parent=11 // pred_region
          _
        $region44: #{tpu_custom_call.1} parent=11 // pred_fallthru
          _
      $region12: #{tpu_custom_call.1} parent=5 // pred_fallthru
        _
      %p291 = scmp.lt.s32.totalorder %s18, 2
      // Predicated region
      $region45: #{tpu_custom_call.1} parent=5 // pred_check
        %p292 = pneg %p291
      $region46: #{tpu_custom_call.1} parent=5 // pred_check_branch
        %294 = sbr.rel (%p292) target = $region48
      $region47: #{tpu_custom_call.1} parent=5 // pred_region
        // Predicated region
        $region49: #{tpu_custom_call.1} parent=47 // pred_check
          %p295 = pneg %p50
        $region50: #{tpu_custom_call.1} parent=47 // pred_check_branch
          %297 = sbr.rel (%p295) target = $region52
        $region51: #{tpu_custom_call.1} parent=47 // pred_region
          %p298 = scmp.lt.s32.totalorder %s25, 1
          %s299 = scalar_select %p298, %s25, 1
          %s300 = smul.addr %s299, 4
          %s301 = scalar_lea.vmem %s0, %s300
        $region52: #{tpu_custom_call.1} parent=47 // pred_fallthru
          _
      $region48: #{tpu_custom_call.1} parent=5 // pred_fallthru
        _
      %p302 = scmp.le.s32.totalorder 1, %s18
      %p303 = scmp.lt.s32.totalorder %s18, 3
      %p304 = pnand %p302, %p303
      %p305 = pneg %p304
      // Predicated region
      $region53: #{tpu_custom_call.1} parent=5 // pred_check
        _
      $region54: #{tpu_custom_call.1} parent=5 // pred_check_branch
        %307 = sbr.rel (%p304) target = $region56
      $region55: #{tpu_custom_call.1} parent=5 // pred_region
        %s308 = ssub.s32 %s18, 1
        %p309 = scmp.lt.s32.totalorder %s27, 1
        %s310 = scalar_select %p309, %s27, 1
        %s311 = smul.addr %s310, 4
        %s312 = scalar_lea.vmem %s0, %s311
        %p313 = pneg %p56
        %p314 = pneg %p53
        %p315 = pneg %p77
        %p316 = pneg %p74
        %p317 = pneg %p98
        %p318 = pneg %p95
        %p319 = pneg %p119
        %p320 = pneg %p116
        %p321 = pneg %p140
        %p322 = pneg %p137
        %p323 = pneg %p161
        %p324 = pneg %p158
        %p325 = pneg %p182
        %p326 = pneg %p179
        %p327 = pneg %p203
        %p328 = pneg %p200
        %p329 = pneg %p224
        %p330 = pneg %p221
        %p331 = pneg %p252
        %p332 = pneg %p249
        %s333 = sand.u32 %s239, 1
        %s334 = scalar_lea.sflag [#allocation3], %s333
        %s335 = sand.u32 %s239, 1
        %s336 = smul.addr %s335, 8
        %s337 = scalar_lea.vmem [#allocation2], %s336
        %p338 = scmp.lt.s32.totalorder %s27, 1
        %s339 = scalar_select %p338, %s27, 1
        %s340 = smul.addr %s339, 4
        %s341 = scalar_lea.vmem %s0, %s340
        %v343 = vld [vmem:[%s341] sm:$0xf]
        %s344 = smul.u32 %s28, 8
        %s345 = sshra.s32 %s344, 3
        %s346 = sand.u32 %s344, 7
        %s347 = smul.addr %s345, 4
        %s348 = scalar_lea.vmem %s341, %s347
        %v349 = vld [vmem:[%s348] sm:$0xf]
        %v350 = vld [vmem:[%s1] sm:$0xf]
        %v351 = vld [vmem:[%s1 + $0x4] sm:$0xf]
        %v352 = vld [vmem:[%s1 + $0x8] sm:$0xf]
        %v353 = vld [vmem:[%s1 + $0xc] sm:$0xf]
        %v354 = vld [vmem:[%s1 + $0x10] sm:$0xf]
        %v355 = vld [vmem:[%s1 + $0x14] sm:$0xf]
        %v356 = vld [vmem:[%s1 + $0x18] sm:$0xf]
        %v357 = vld [vmem:[%s1 + $0x1c] sm:$0xf]
        %v358 = vld [vmem:[%s1 + $0x20] sm:$0xf]
        %v359 = vld [vmem:[%s1 + $0x24] sm:$0xf]
        %v360 = vld [vmem:[%s1 + $0x28] sm:$0xf]
        %v361 = vld [vmem:[%s1 + $0x2c] sm:$0xf]
        %v362 = vld [vmem:[%s1 + $0x30] sm:$0xf]
        %v363 = vld [vmem:[%s1 + $0x34] sm:$0xf]
        %v364 = vld [vmem:[%s1 + $0x38] sm:$0xf]
        %v365 = vld [vmem:[%s1 + $0x3c] sm:$0xf]
        %v366 = vld [vmem:[%s2] sm:$0x1]
        %v368 = vlaneseq
        %v369 = vshrl.u32 %v368, 7
        %v370 = vsub.s32 0, %v369
        %v371 = vrot.slane %v366, %v370
        %v389 = vunpack.c.l.b16 %v350
        %v390 = vunpack.c.l.b16 %v351
        %v391 = vunpack.c.l.b16 %v352
        %v392 = vunpack.c.l.b16 %v353
        %v393 = vunpack.c.l.b16 %v354
        %v394 = vunpack.c.l.b16 %v355
        %v395 = vunpack.c.l.b16 %v356
        %v396 = vunpack.c.l.b16 %v357
        %v397 = vunpack.c.l.b16 %v358
        %v398 = vunpack.c.l.b16 %v359
        %v399 = vunpack.c.l.b16 %v360
        %v400 = vunpack.c.l.b16 %v361
        %v401 = vunpack.c.l.b16 %v362
        %v402 = vunpack.c.l.b16 %v363
        %v403 = vunpack.c.l.b16 %v364
        %v404 = vunpack.c.l.b16 %v365
        %v405 = vpack.c.b16 %v390, %v389
        %v406 = vpack.c.b16 %v392, %v391
        %v407 = vpack.c.b16 %v394, %v393
        %v408 = vpack.c.b16 %v396, %v395
        %v409 = vpack.c.b16 %v398, %v397
        %v410 = vpack.c.b16 %v400, %v399
        %v411 = vpack.c.b16 %v402, %v401
        %v412 = vpack.c.b16 %v404, %v403
        %421 = vmatprep.subr.bf16.mxu0 0
        %422 = vmatpush1.bf16.msra.mxu0 %v405
        %423 = vmatprep.subr.bf16.mxu0 0
        %424 = vmatpush1.bf16.msra.mxu0 %v406
        %425 = vmatprep.subr.bf16.mxu0 0
        %426 = vmatpush1.bf16.msra.mxu0 %v407
        %427 = vmatprep.subr.bf16.mxu0 0
        %428 = vmatpush1.bf16.msra.mxu0 %v408
        %429 = vmatprep.subr.bf16.mxu0 0
        %430 = vmatpush1.bf16.msra.mxu0 %v409
        %431 = vmatprep.subr.bf16.mxu0 0
        %432 = vmatpush1.bf16.msra.mxu0 %v410
        %433 = vmatprep.subr.bf16.mxu0 0
        %434 = vmatpush1.bf16.msra.mxu0 %v411
        %435 = vmatprep.subr.bf16.mxu0 0
        %436 = vmatpush1.bf16.msra.mxu0 %v412
        %437 = vmatprep.subr.bf16.mxu0 0
        %438 = vmatpush1.bf16.msra.mxu0 0
        %439 = vmatprep.subr.bf16.mxu0 0
        %440 = vmatpush1.bf16.msra.mxu0 0
        %441 = vmatprep.subr.bf16.mxu0 0
        %442 = vmatpush1.bf16.msra.mxu0 0
        %443 = vmatprep.subr.bf16.mxu0 0
        %444 = vmatpush1.bf16.msra.mxu0 0
        %445 = vmatprep.subr.bf16.mxu0 0
        %446 = vmatpush1.bf16.msra.mxu0 0
        %447 = vmatprep.subr.bf16.mxu0 0
        %448 = vmatpush1.bf16.msra.mxu0 0
        %449 = vmatprep.subr.bf16.mxu0 0
        %450 = vmatpush1.bf16.msra.mxu0 0
        %451 = vmatprep.subr.bf16.mxu0 0
        %452 = vmatpush1.bf16.msra.mxu0 0
        %453 = vmatprep.mubr.bf16.mxu0 0
        %454 = vmatmul.mubr.bf16.gmra.mrb[0].mxu0 %v349
        %v455 = vpop.f32.mrb[0].mxu0
        %v456 = vadd.f32 %v371, %v455
        %v457 = vpop.f32.mrb[0].mxu0
        %v458 = vpop.f32.mrb[0].mxu0
        %v459 = vpop.f32.mrb[0].mxu0
        %460 = vdwg.mxu0
        %v461 = vld [vmem:[%s3] sm:$0xf]
        %v462 = vld [vmem:[%s3 + $0x4] sm:$0xf]
        %v463 = vld [vmem:[%s3 + $0x8] sm:$0xf]
        %v464 = vld [vmem:[%s3 + $0xc] sm:$0xf]
        %v465 = vld [vmem:[%s3 + $0x10] sm:$0xf]
        %v466 = vld [vmem:[%s3 + $0x14] sm:$0xf]
        %v467 = vld [vmem:[%s3 + $0x18] sm:$0xf]
        %v468 = vld [vmem:[%s3 + $0x1c] sm:$0xf]
        %v469 = vld [vmem:[%s3 + $0x20] sm:$0xf]
        %v470 = vld [vmem:[%s3 + $0x24] sm:$0xf]
        %v471 = vld [vmem:[%s3 + $0x28] sm:$0xf]
        %v472 = vld [vmem:[%s3 + $0x2c] sm:$0xf]
        %v473 = vld [vmem:[%s3 + $0x30] sm:$0xf]
        %v474 = vld [vmem:[%s3 + $0x34] sm:$0xf]
        %v475 = vld [vmem:[%s3 + $0x38] sm:$0xf]
        %v476 = vld [vmem:[%s3 + $0x3c] sm:$0xf]
        %v477 = vld [vmem:[%s4] sm:$0x1]
        %v479 = vlaneseq
        %v480 = vshrl.u32 %v479, 7
        %v481 = vsub.s32 0, %v480
        %v482 = vrot.slane %v477, %v481
        %v500 = vunpack.c.l.b16 %v461
        %v501 = vunpack.c.l.b16 %v462
        %v502 = vunpack.c.l.b16 %v463
        %v503 = vunpack.c.l.b16 %v464
        %v504 = vunpack.c.l.b16 %v465
        %v505 = vunpack.c.l.b16 %v466
        %v506 = vunpack.c.l.b16 %v467
        %v507 = vunpack.c.l.b16 %v468
        %v508 = vunpack.c.l.b16 %v469
        %v509 = vunpack.c.l.b16 %v470
        %v510 = vunpack.c.l.b16 %v471
        %v511 = vunpack.c.l.b16 %v472
        %v512 = vunpack.c.l.b16 %v473
        %v513 = vunpack.c.l.b16 %v474
        %v514 = vunpack.c.l.b16 %v475
        %v515 = vunpack.c.l.b16 %v476
        %v516 = vpack.c.b16 %v501, %v500
        %v517 = vpack.c.b16 %v503, %v502
        %v518 = vpack.c.b16 %v505, %v504
        %v519 = vpack.c.b16 %v507, %v506
        %v520 = vpack.c.b16 %v509, %v508
        %v521 = vpack.c.b16 %v511, %v510
        %v522 = vpack.c.b16 %v513, %v512
        %v523 = vpack.c.b16 %v515, %v514
        %532 = vmatprep.subr.bf16.mxu0 0
        %533 = vmatpush1.bf16.msra.mxu0 %v516
        %534 = vmatprep.subr.bf16.mxu0 0
        %535 = vmatpush1.bf16.msra.mxu0 %v517
        %536 = vmatprep.subr.bf16.mxu0 0
        %537 = vmatpush1.bf16.msra.mxu0 %v518
        %538 = vmatprep.subr.bf16.mxu0 0
        %539 = vmatpush1.bf16.msra.mxu0 %v519
        %540 = vmatprep.subr.bf16.mxu0 0
        %541 = vmatpush1.bf16.msra.mxu0 %v520
        %542 = vmatprep.subr.bf16.mxu0 0
        %543 = vmatpush1.bf16.msra.mxu0 %v521
        %544 = vmatprep.subr.bf16.mxu0 0
        %545 = vmatpush1.bf16.msra.mxu0 %v522
        %546 = vmatprep.subr.bf16.mxu0 0
        %547 = vmatpush1.bf16.msra.mxu0 %v523
        %548 = vmatprep.subr.bf16.mxu0 0
        %549 = vmatpush1.bf16.msra.mxu0 0
        %550 = vmatprep.subr.bf16.mxu0 0
        %551 = vmatpush1.bf16.msra.mxu0 0
        %552 = vmatprep.subr.bf16.mxu0 0
        %553 = vmatpush1.bf16.msra.mxu0 0
        %554 = vmatprep.subr.bf16.mxu0 0
        %555 = vmatpush1.bf16.msra.mxu0 0
        %556 = vmatprep.subr.bf16.mxu0 0
        %557 = vmatpush1.bf16.msra.mxu0 0
        %558 = vmatprep.subr.bf16.mxu0 0
        %559 = vmatpush1.bf16.msra.mxu0 0
        %560 = vmatprep.subr.bf16.mxu0 0
        %561 = vmatpush1.bf16.msra.mxu0 0
        %562 = vmatprep.subr.bf16.mxu0 0
        %563 = vmatpush1.bf16.msra.mxu0 0
        %564 = vmatprep.mubr.bf16.mxu0 0
        %565 = vmatmul.mubr.bf16.gmra.mrb[0].mxu0 %v343
        %v566 = vpop.f32.mrb[0].mxu0
        %v567 = vadd.f32 %v482, %v566
        %v568 = vpop.f32.mrb[0].mxu0
        %v569 = vpop.f32.mrb[0].mxu0
        %v570 = vpop.f32.mrb[0].mxu0
        %571 = vdwg.mxu0
        %v572 = vld [vmem:[%s5] sm:$0xf]
        %v573 = vld [vmem:[%s5 + $0x4] sm:$0xf]
        %v574 = vld [vmem:[%s5 + $0x8] sm:$0xf]
        %v575 = vld [vmem:[%s5 + $0xc] sm:$0xf]
        %v576 = vld [vmem:[%s5 + $0x10] sm:$0xf]
        %v577 = vld [vmem:[%s5 + $0x14] sm:$0xf]
        %v578 = vld [vmem:[%s5 + $0x18] sm:$0xf]
        %v579 = vld [vmem:[%s5 + $0x1c] sm:$0xf]
        %v580 = vld [vmem:[%s5 + $0x20] sm:$0xf]
        %v581 = vld [vmem:[%s5 + $0x24] sm:$0xf]
        %v582 = vld [vmem:[%s5 + $0x28] sm:$0xf]
        %v583 = vld [vmem:[%s5 + $0x2c] sm:$0xf]
        %v584 = vld [vmem:[%s5 + $0x30] sm:$0xf]
        %v585 = vld [vmem:[%s5 + $0x34] sm:$0xf]
        %v586 = vld [vmem:[%s5 + $0x38] sm:$0xf]
        %v587 = vld [vmem:[%s5 + $0x3c] sm:$0xf]
        %v588 = vld [vmem:[%s6] sm:$0x1]
        %v590 = vlaneseq
        %v591 = vshrl.u32 %v590, 7
        %v592 = vsub.s32 0, %v591
        %v593 = vrot.slane %v588, %v592
        %v611 = vunpack.c.l.b16 %v572
        %v612 = vunpack.c.l.b16 %v573
        %v613 = vunpack.c.l.b16 %v574
        %v614 = vunpack.c.l.b16 %v575
        %v615 = vunpack.c.l.b16 %v576
        %v616 = vunpack.c.l.b16 %v577
        %v617 = vunpack.c.l.b16 %v578
        %v618 = vunpack.c.l.b16 %v579
        %v619 = vunpack.c.l.b16 %v580
        %v620 = vunpack.c.l.b16 %v581
        %v621 = vunpack.c.l.b16 %v582
        %v622 = vunpack.c.l.b16 %v583
        %v623 = vunpack.c.l.b16 %v584
        %v624 = vunpack.c.l.b16 %v585
        %v625 = vunpack.c.l.b16 %v586
        %v626 = vunpack.c.l.b16 %v587
        %v627 = vpack.c.b16 %v612, %v611
        %v628 = vpack.c.b16 %v614, %v613
        %v629 = vpack.c.b16 %v616, %v615
        %v630 = vpack.c.b16 %v618, %v617
        %v631 = vpack.c.b16 %v620, %v619
        %v632 = vpack.c.b16 %v622, %v621
        %v633 = vpack.c.b16 %v624, %v623
        %v634 = vpack.c.b16 %v626, %v625
        %643 = vmatprep.subr.bf16.mxu0 0
        %644 = vmatpush1.bf16.msra.mxu0 %v627
        %645 = vmatprep.subr.bf16.mxu0 0
        %646 = vmatpush1.bf16.msra.mxu0 %v628
        %647 = vmatprep.subr.bf16.mxu0 0
        %648 = vmatpush1.bf16.msra.mxu0 %v629
        %649 = vmatprep.subr.bf16.mxu0 0
        %650 = vmatpush1.bf16.msra.mxu0 %v630
        %651 = vmatprep.subr.bf16.mxu0 0
        %652 = vmatpush1.bf16.msra.mxu0 %v631
        %653 = vmatprep.subr.bf16.mxu0 0
        %654 = vmatpush1.bf16.msra.mxu0 %v632
        %655 = vmatprep.subr.bf16.mxu0 0
        %656 = vmatpush1.bf16.msra.mxu0 %v633
        %657 = vmatprep.subr.bf16.mxu0 0
        %658 = vmatpush1.bf16.msra.mxu0 %v634
        %659 = vmatprep.subr.bf16.mxu0 0
        %660 = vmatpush1.bf16.msra.mxu0 0
        %661 = vmatprep.subr.bf16.mxu0 0
        %662 = vmatpush1.bf16.msra.mxu0 0
        %663 = vmatprep.subr.bf16.mxu0 0
        %664 = vmatpush1.bf16.msra.mxu0 0
        %665 = vmatprep.subr.bf16.mxu0 0
        %666 = vmatpush1.bf16.msra.mxu0 0
        %667 = vmatprep.subr.bf16.mxu0 0
        %668 = vmatpush1.bf16.msra.mxu0 0
        %669 = vmatprep.subr.bf16.mxu0 0
        %670 = vmatpush1.bf16.msra.mxu0 0
        %671 = vmatprep.subr.bf16.mxu0 0
        %672 = vmatpush1.bf16.msra.mxu0 0
        %673 = vmatprep.subr.bf16.mxu0 0
        %674 = vmatpush1.bf16.msra.mxu0 0
        %675 = vmatprep.mubr.bf16.mxu0 0
        %676 = vmatmul.mubr.bf16.gmra.mrb[0].mxu0 %v343
        %v677 = vpop.f32.mrb[0].mxu0
        %v678 = vadd.f32 %v593, %v677
        %v679 = vpop.f32.mrb[0].mxu0
        %v680 = vpop.f32.mrb[0].mxu0
        %v681 = vpop.f32.mrb[0].mxu0
        %682 = vdwg.mxu0
        %v683 = vpack.c.bf16 %v456, %v456
        %v684 = vpack.c.bf16 %v567, %v567
        %v685 = vpack.c.bf16 %v678, %v678
        %vm686 = vcmask 64512
        %v688 = vsel %vm686, %v683, 0
        %v691 = vsel %vm686, %v684, 0
        %693 = vmatprep.subr.bf16.mxu0 0
        %694 = vmatpush1.bf16.xpose.msra.mxu0 %v691
        %695 = vmatprep.subr.bf16.mxu0 0
        %696 = vmatpush1.bf16.xpose.msra.mxu0 0
        %697 = vmatprep.subr.bf16.mxu0 0
        %698 = vmatpush1.bf16.xpose.msra.mxu0 0
        %699 = vmatprep.subr.bf16.mxu0 0
        %700 = vmatpush1.bf16.xpose.msra.mxu0 0
        %701 = vmatprep.subr.bf16.mxu0 0
        %702 = vmatpush1.bf16.xpose.msra.mxu0 0
        %703 = vmatprep.subr.bf16.mxu0 0
        %704 = vmatpush1.bf16.xpose.msra.mxu0 0
        %705 = vmatprep.subr.bf16.mxu0 0
        %706 = vmatpush1.bf16.xpose.msra.mxu0 0
        %707 = vmatprep.subr.bf16.mxu0 0
        %708 = vmatpush1.bf16.xpose.msra.mxu0 0
        %709 = vmatprep.subr.bf16.mxu0 0
        %710 = vmatpush1.bf16.xpose.msra.mxu0 0
        %711 = vmatprep.subr.bf16.mxu0 0
        %712 = vmatpush1.bf16.xpose.msra.mxu0 0
        %713 = vmatprep.subr.bf16.mxu0 0
        %714 = vmatpush1.bf16.xpose.msra.mxu0 0
        %715 = vmatprep.subr.bf16.mxu0 0
        %716 = vmatpush1.bf16.xpose.msra.mxu0 0
        %717 = vmatprep.subr.bf16.mxu0 0
        %718 = vmatpush1.bf16.xpose.msra.mxu0 0
        %719 = vmatprep.subr.bf16.mxu0 0
        %720 = vmatpush1.bf16.xpose.msra.mxu0 0
        %721 = vmatprep.subr.bf16.mxu0 0
        %722 = vmatpush1.bf16.xpose.msra.mxu0 0
        %723 = vmatprep.subr.bf16.mxu0 0
        %724 = vmatpush1.bf16.xpose.msra.mxu0 0
        %725 = vmatprep.mubr.bf16.mxu0 0
        %726 = vmatmul.mubr.bf16.gmra.mrb[0].mxu0 %v688
        %v727 = vpop.f32.mrb[0].mxu0
        %v728 = vadd.f32 0.0, %v727
        %v729 = vpop.f32.mrb[0].mxu0
        %v730 = vpop.f32.mrb[0].mxu0
        %v731 = vpop.f32.mrb[0].mxu0
        %732 = vdwg.mxu0
        %v733 = vsel %vm686, %v728, -inf
        %734 = vmax.xlane.f32.xlu0 %v733
        %v735 = vpop.xlane.xlu0 %734
        %v736 = vsub.f32 %v728, %v735
        %v737 = vmul.f32 %v736, 1.442695
        %v738 = vpow.pop %v737
        %v739 = vsel %vm686, %v738, 0.0
        %740 = vadd.xlane.f32.xlu0 %v739
        %v741 = vpop.xlane.xlu0 %740
        %v742 = vpack.c.bf16 %v738, %v738
        %v744 = vsel %vm686, %v742, 0
        %vm746 = vcmask 1043456
        %v748 = vsel %vm746, %v685, 0
        %750 = vmatprep.subr.bf16.mxu0 0
        %751 = vmatpush1.bf16.msra.mxu0 %v748
        %752 = vmatprep.subr.bf16.mxu0 0
        %753 = vmatpush1.bf16.msra.mxu0 0
        %754 = vmatprep.subr.bf16.mxu0 0
        %755 = vmatpush1.bf16.msra.mxu0 0
        %756 = vmatprep.subr.bf16.mxu0 0
        %757 = vmatpush1.bf16.msra.mxu0 0
        %758 = vmatprep.subr.bf16.mxu0 0
        %759 = vmatpush1.bf16.msra.mxu0 0
        %760 = vmatprep.subr.bf16.mxu0 0
        %761 = vmatpush1.bf16.msra.mxu0 0
        %762 = vmatprep.subr.bf16.mxu0 0
        %763 = vmatpush1.bf16.msra.mxu0 0
        %764 = vmatprep.subr.bf16.mxu0 0
        %765 = vmatpush1.bf16.msra.mxu0 0
        %766 = vmatprep.subr.bf16.mxu0 0
        %767 = vmatpush1.bf16.msra.mxu0 0
        %768 = vmatprep.subr.bf16.mxu0 0
        %769 = vmatpush1.bf16.msra.mxu0 0
        %770 = vmatprep.subr.bf16.mxu0 0
        %771 = vmatpush1.bf16.msra.mxu0 0
        %772 = vmatprep.subr.bf16.mxu0 0
        %773 = vmatpush1.bf16.msra.mxu0 0
        %774 = vmatprep.subr.bf16.mxu0 0
        %775 = vmatpush1.bf16.msra.mxu0 0
        %776 = vmatprep.subr.bf16.mxu0 0
        %777 = vmatpush1.bf16.msra.mxu0 0
        %778 = vmatprep.subr.bf16.mxu0 0
        %779 = vmatpush1.bf16.msra.mxu0 0
        %780 = vmatprep.subr.bf16.mxu0 0
        %781 = vmatpush1.bf16.msra.mxu0 0
        %782 = vmatprep.mubr.bf16.mxu0 0
        %783 = vmatmul.mubr.bf16.gmra.mrb[0].mxu0 %v744
        %v784 = vpop.f32.mrb[0].mxu0
        %v785 = vadd.f32 0.0, %v784
        %v786 = vpop.f32.mrb[0].mxu0
        %v787 = vpop.f32.mrb[0].mxu0
        %v788 = vpop.f32.mrb[0].mxu0
        %789 = vdwg.mxu0
        %v790 = vrcp.pop %v741
        %v791 = vmul.f32 %v785, %v790
        %v792 = vpack.c.bf16 %v791, %v791
        %v793 = vld [vmem:[%s7] sm:$0xf]
        %795 = vrot.lane.b32.xlu0 %v683, 120
        %v796 = vpop.permute.xlu0 %795
        %798 = vrot.lane.b32.xlu0 %v684, 120
        %v799 = vpop.permute.xlu0 %798
        %v801 = vsel %vm686, %v796, 0
        %v804 = vsel %vm686, %v799, 0
        %806 = vmatprep.subr.bf16.mxu0 0
        %807 = vmatpush1.bf16.xpose.msra.mxu0 %v804
        %808 = vmatprep.subr.bf16.mxu0 0
        %809 = vmatpush1.bf16.xpose.msra.mxu0 0
        %810 = vmatprep.subr.bf16.mxu0 0
        %811 = vmatpush1.bf16.xpose.msra.mxu0 0
        %812 = vmatprep.subr.bf16.mxu0 0
        %813 = vmatpush1.bf16.xpose.msra.mxu0 0
        %814 = vmatprep.subr.bf16.mxu0 0
        %815 = vmatpush1.bf16.xpose.msra.mxu0 0
        %816 = vmatprep.subr.bf16.mxu0 0
        %817 = vmatpush1.bf16.xpose.msra.mxu0 0
        %818 = vmatprep.subr.bf16.mxu0 0
        %819 = vmatpush1.bf16.xpose.msra.mxu0 0
        %820 = vmatprep.subr.bf16.mxu0 0
        %821 = vmatpush1.bf16.xpose.msra.mxu0 0
        %822 = vmatprep.subr.bf16.mxu0 0
        %823 = vmatpush1.bf16.xpose.msra.mxu0 0
        %824 = vmatprep.subr.bf16.mxu0 0
        %825 = vmatpush1.bf16.xpose.msra.mxu0 0
        %826 = vmatprep.subr.bf16.mxu0 0
        %827 = vmatpush1.bf16.xpose.msra.mxu0 0
        %828 = vmatprep.subr.bf16.mxu0 0
        %829 = vmatpush1.bf16.xpose.msra.mxu0 0
        %830 = vmatprep.subr.bf16.mxu0 0
        %831 = vmatpush1.bf16.xpose.msra.mxu0 0
        %832 = vmatprep.subr.bf16.mxu0 0
        %833 = vmatpush1.bf16.xpose.msra.mxu0 0
        %834 = vmatprep.subr.bf16.mxu0 0
        %835 = vmatpush1.bf16.xpose.msra.mxu0 0
        %836 = vmatprep.subr.bf16.mxu0 0
        %837 = vmatpush1.bf16.xpose.msra.mxu0 0
        %838 = vmatprep.mubr.bf16.mxu0 0
        %839 = vmatmul.mubr.bf16.gmra.mrb[0].mxu0 %v801
        %v840 = vpop.f32.mrb[0].mxu0
        %v841 = vadd.f32 0.0, %v840
        %v842 = vpop.f32.mrb[0].mxu0
        %v843 = vpop.f32.mrb[0].mxu0
        %v844 = vpop.f32.mrb[0].mxu0
        %845 = vdwg.mxu0
        %v846 = vsel %vm686, %v841, -inf
        %847 = vmax.xlane.f32.xlu0 %v846
        %v848 = vpop.xlane.xlu0 %847
        %v849 = vsub.f32 %v841, %v848
        %v850 = vmul.f32 %v849, 1.442695
        %v851 = vpow.pop %v850
        %v852 = vsel %vm686, %v851, 0.0
        %853 = vadd.xlane.f32.xlu0 %v852
        %v854 = vpop.xlane.xlu0 %853
        %v855 = vpack.c.bf16 %v851, %v851
        %857 = vrot.lane.b32.xlu0 %v685, 120
        %v858 = vpop.permute.xlu0 %857
        %v860 = vsel %vm686, %v855, 0
        %v863 = vsel %vm746, %v858, 0
        %865 = vmatprep.subr.bf16.mxu0 0
        %866 = vmatpush1.bf16.msra.mxu0 %v863
        %867 = vmatprep.subr.bf16.mxu0 0
        %868 = vmatpush1.bf16.msra.mxu0 0
        %869 = vmatprep.subr.bf16.mxu0 0
        %870 = vmatpush1.bf16.msra.mxu0 0
        %871 = vmatprep.subr.bf16.mxu0 0
        %872 = vmatpush1.bf16.msra.mxu0 0
        %873 = vmatprep.subr.bf16.mxu0 0
        %874 = vmatpush1.bf16.msra.mxu0 0
        %875 = vmatprep.subr.bf16.mxu0 0
        %876 = vmatpush1.bf16.msra.mxu0 0
        %877 = vmatprep.subr.bf16.mxu0 0
        %878 = vmatpush1.bf16.msra.mxu0 0
        %879 = vmatprep.subr.bf16.mxu0 0
        %880 = vmatpush1.bf16.msra.mxu0 0
        %881 = vmatprep.subr.bf16.mxu0 0
        %882 = vmatpush1.bf16.msra.mxu0 0
        %883 = vmatprep.subr.bf16.mxu0 0
        %884 = vmatpush1.bf16.msra.mxu0 0
        %885 = vmatprep.subr.bf16.mxu0 0
        %886 = vmatpush1.bf16.msra.mxu0 0
        %887 = vmatprep.subr.bf16.mxu0 0
        %888 = vmatpush1.bf16.msra.mxu0 0
        %889 = vmatprep.subr.bf16.mxu0 0
        %890 = vmatpush1.bf16.msra.mxu0 0
        %891 = vmatprep.subr.bf16.mxu0 0
        %892 = vmatpush1.bf16.msra.mxu0 0
        %893 = vmatprep.subr.bf16.mxu0 0
        %894 = vmatpush1.bf16.msra.mxu0 0
        %895 = vmatprep.subr.bf16.mxu0 0
        %896 = vmatpush1.bf16.msra.mxu0 0
        %897 = vmatprep.mubr.bf16.mxu0 0
        %898 = vmatmul.mubr.bf16.gmra.mrb[0].mxu0 %v860
        %v899 = vpop.f32.mrb[0].mxu0
        %v900 = vadd.f32 0.0, %v899
        %v901 = vpop.f32.mrb[0].mxu0
        %v902 = vpop.f32.mrb[0].mxu0
        %v903 = vpop.f32.mrb[0].mxu0
        %904 = vdwg.mxu0
        %v905 = vrcp.pop %v854
        %v906 = vmul.f32 %v900, %v905
        %v907 = vpack.c.bf16 %v906, %v906
        %v908 = vld [vmem:[%s7 + $0x4] sm:$0xf]
        %v910 = vsel %vm686, %v907, 0
        %v913 = vsel %vm746, %v908, 0
        %915 = vmatprep.subr.bf16.mxu0 0
        %916 = vmatpush1.bf16.msra.mxu0 %v913
        %917 = vmatprep.subr.bf16.mxu0 0
        %918 = vmatpush1.bf16.msra.mxu0 0
        %919 = vmatprep.subr.bf16.mxu0 0
        %920 = vmatpush1.bf16.msra.mxu0 0
        %921 = vmatprep.subr.bf16.mxu0 0
        %922 = vmatpush1.bf16.msra.mxu0 0
        %923 = vmatprep.subr.bf16.mxu0 0
        %924 = vmatpush1.bf16.msra.mxu0 0
        %925 = vmatprep.subr.bf16.mxu0 0
        %926 = vmatpush1.bf16.msra.mxu0 0
        %927 = vmatprep.subr.bf16.mxu0 0
        %928 = vmatpush1.bf16.msra.mxu0 0
        %929 = vmatprep.subr.bf16.mxu0 0
        %930 = vmatpush1.bf16.msra.mxu0 0
        %931 = vmatprep.subr.bf16.mxu0 0
        %932 = vmatpush1.bf16.msra.mxu0 0
        %933 = vmatprep.subr.bf16.mxu0 0
        %934 = vmatpush1.bf16.msra.mxu0 0
        %935 = vmatprep.subr.bf16.mxu0 0
        %936 = vmatpush1.bf16.msra.mxu0 0
        %937 = vmatprep.subr.bf16.mxu0 0
        %938 = vmatpush1.bf16.msra.mxu0 0
        %939 = vmatprep.subr.bf16.mxu0 0
        %940 = vmatpush1.bf16.msra.mxu0 0
        %941 = vmatprep.subr.bf16.mxu0 0
        %942 = vmatpush1.bf16.msra.mxu0 0
        %943 = vmatprep.subr.bf16.mxu0 0
        %944 = vmatpush1.bf16.msra.mxu0 0
        %945 = vmatprep.subr.bf16.mxu0 0
        %946 = vmatpush1.bf16.msra.mxu0 0
        %947 = vmatprep.mubr.bf16.mxu0 0
        %948 = vmatmul.mubr.bf16.gmra.mrb[0].mxu0 %v910
        %v949 = vpop.f32.mrb[0].mxu0
        %v950 = vadd.f32 0.0, %v949
        %v951 = vpop.f32.mrb[0].mxu0
        %v952 = vpop.f32.mrb[0].mxu0
        %v953 = vpop.f32.mrb[0].mxu0
        %954 = vdwg.mxu0
        %v956 = vsel %vm686, %v792, 0
        %v959 = vsel %vm746, %v793, 0
        %961 = vmatprep.subr.bf16.mxu0 0
        %962 = vmatpush1.bf16.msra.mxu0 %v959
        %963 = vmatprep.subr.bf16.mxu0 0
        %964 = vmatpush1.bf16.msra.mxu0 0
        %965 = vmatprep.subr.bf16.mxu0 0
        %966 = vmatpush1.bf16.msra.mxu0 0
        %967 = vmatprep.subr.bf16.mxu0 0
        %968 = vmatpush1.bf16.msra.mxu0 0
        %969 = vmatprep.subr.bf16.mxu0 0
        %970 = vmatpush1.bf16.msra.mxu0 0
        %971 = vmatprep.subr.bf16.mxu0 0
        %972 = vmatpush1.bf16.msra.mxu0 0
        %973 = vmatprep.subr.bf16.mxu0 0
        %974 = vmatpush1.bf16.msra.mxu0 0
        %975 = vmatprep.subr.bf16.mxu0 0
        %976 = vmatpush1.bf16.msra.mxu0 0
        %977 = vmatprep.subr.bf16.mxu0 0
        %978 = vmatpush1.bf16.msra.mxu0 0
        %979 = vmatprep.subr.bf16.mxu0 0
        %980 = vmatpush1.bf16.msra.mxu0 0
        %981 = vmatprep.subr.bf16.mxu0 0
        %982 = vmatpush1.bf16.msra.mxu0 0
        %983 = vmatprep.subr.bf16.mxu0 0
        %984 = vmatpush1.bf16.msra.mxu0 0
        %985 = vmatprep.subr.bf16.mxu0 0
        %986 = vmatpush1.bf16.msra.mxu0 0
        %987 = vmatprep.subr.bf16.mxu0 0
        %988 = vmatpush1.bf16.msra.mxu0 0
        %989 = vmatprep.subr.bf16.mxu0 0
        %990 = vmatpush1.bf16.msra.mxu0 0
        %991 = vmatprep.subr.bf16.mxu0 0
        %992 = vmatpush1.bf16.msra.mxu0 0
        %993 = vmatprep.mubr.bf16.mxu0 0
        %994 = vmatmul.mubr.bf16.gmra.mrb[0].mxu0 %v956
        %v995 = vpop.f32.mrb[0].mxu0
        %v996 = vadd.f32 %v950, %v995
        %v997 = vpop.f32.mrb[0].mxu0
        %v998 = vpop.f32.mrb[0].mxu0
        %v999 = vpop.f32.mrb[0].mxu0
        %1000 = vdwg.mxu0
        %1001 = vrot.lane.b32.xlu0 %v683, 112
        %v1002 = vpop.permute.xlu0 %1001
        %1003 = vrot.lane.b32.xlu0 %v684, 112
        %v1004 = vpop.permute.xlu0 %1003
        %v1006 = vsel %vm686, %v1002, 0
        %v1009 = vsel %vm686, %v1004, 0
        %1011 = vmatprep.subr.bf16.mxu0 0
        %1012 = vmatpush1.bf16.xpose.msra.mxu0 %v1009
        %1013 = vmatprep.subr.bf16.mxu0 0
        %1014 = vmatpush1.bf16.xpose.msra.mxu0 0
        %1015 = vmatprep.subr.bf16.mxu0 0
        %1016 = vmatpush1.bf16.xpose.msra.mxu0 0
        %1017 = vmatprep.subr.bf16.mxu0 0
        %1018 = vmatpush1.bf16.xpose.msra.mxu0 0
        %1019 = vmatprep.subr.bf16.mxu0 0
        %1020 = vmatpush1.bf16.xpose.msra.mxu0 0
        %1021 = vmatprep.subr.bf16.mxu0 0
        %1022 = vmatpush1.bf16.xpose.msra.mxu0 0
        %1023 = vmatprep.subr.bf16.mxu0 0
        %1024 = vmatpush1.bf16.xpose.msra.mxu0 0
        %1025 = vmatprep.subr.bf16.mxu0 0
        %1026 = vmatpush1.bf16.xpose.msra.mxu0 0
        %1027 = vmatprep.subr.bf16.mxu0 0
        %1028 = vmatpush1.bf16.xpose.msra.mxu0 0
        %1029 = vmatprep.subr.bf16.mxu0 0
        %1030 = vmatpush1.bf16.xpose.msra.mxu0 0
        %1031 = vmatprep.subr.bf16.mxu0 0
        %1032 = vmatpush1.bf16.xpose.msra.mxu0 0
        %1033 = vmatprep.subr.bf16.mxu0 0
        %1034 = vmatpush1.bf16.xpose.msra.mxu0 0
        %1035 = vmatprep.subr.bf16.mxu0 0
        %1036 = vmatpush1.bf16.xpose.msra.mxu0 0
        %1037 = vmatprep.subr.bf16.mxu0 0
        %1038 = vmatpush1.bf16.xpose.msra.mxu0 0
        %1039 = vmatprep.subr.bf16.mxu0 0
        %1040 = vmatpush1.bf16.xpose.msra.mxu0 0
        %1041 = vmatprep.subr.bf16.mxu0 0
        %1042 = vmatpush1.bf16.xpose.msra.mxu0 0
        %1043 = vmatprep.mubr.bf16.mxu0 0
        %1044 = vmatmul.mubr.bf16.gmra.mrb[0].mxu0 %v1006
        %v1045 = vpop.f32.mrb[0].mxu0
        %v1046 = vadd.f32 0.0, %v1045
        %v1047 = vpop.f32.mrb[0].mxu0
        %v1048 = vpop.f32.mrb[0].mxu0
        %v1049 = vpop.f32.mrb[0].mxu0
        %1050 = vdwg.mxu0
        %v1051 = vsel %vm686, %v1046, -inf
        %1052 = vmax.xlane.f32.xlu0 %v1051
        %v1053 = vpop.xlane.xlu0 %1052
        %v1054 = vsub.f32 %v1046, %v1053
        %v1055 = vmul.f32 %v1054, 1.442695
        %v1056 = vpow.pop %v1055
        %v1057 = vsel %vm686, %v1056, 0.0
        %1058 = vadd.xlane.f32.xlu0 %v1057
        %v1059 = vpop.xlane.xlu0 %1058
        %v1060 = vpack.c.bf16 %v1056, %v1056
        %1061 = vrot.lane.b32.xlu0 %v685, 112
        %v1062 = vpop.permute.xlu0 %1061
        %v1064 = vsel %vm686, %v1060, 0
        %v1067 = vsel %vm746, %v1062, 0
        %1069 = vmatprep.subr.bf16.mxu0 0
        %1070 = vmatpush1.bf16.msra.mxu0 %v1067
        %1071 = vmatprep.subr.bf16.mxu0 0
        %1072 = vmatpush1.bf16.msra.mxu0 0
        %1073 = vmatprep.subr.bf16.mxu0 0
        %1074 = vmatpush1.bf16.msra.mxu0 0
        %1075 = vmatprep.subr.bf16.mxu0 0
        %1076 = vmatpush1.bf16.msra.mxu0 0
        %1077 = vmatprep.subr.bf16.mxu0 0
        %1078 = vmatpush1.bf16.msra.mxu0 0
        %1079 = vmatprep.subr.bf16.mxu0 0
        %1080 = vmatpush1.bf16.msra.mxu0 0
        %1081 = vmatprep.subr.bf16.mxu0 0
        %1082 = vmatpush1.bf16.msra.mxu0 0
        %1083 = vmatprep.subr.bf16.mxu0 0
        %1084 = vmatpush1.bf16.msra.mxu0 0
        %1085 = vmatprep.subr.bf16.mxu0 0
        %1086 = vmatpush1.bf16.msra.mxu0 0
        %1087 = vmatprep.subr.bf16.mxu0 0
        %1088 = vmatpush1.bf16.msra.mxu0 0
        %1089 = vmatprep.subr.bf16.mxu0 0
        %1090 = vmatpush1.bf16.msra.mxu0 0
        %1091 = vmatprep.subr.bf16.mxu0 0
        %1092 = vmatpush1.bf16.msra.mxu0 0
        %1093 = vmatprep.subr.bf16.mxu0 0
        %1094 = vmatpush1.bf16.msra.mxu0 0
        %1095 = vmatprep.subr.bf16.mxu0 0
        %1096 = vmatpush1.bf16.msra.mxu0 0
        %1097 = vmatprep.subr.bf16.mxu0 0
        %1098 = vmatpush1.bf16.msra.mxu0 0
        %1099 = vmatprep.subr.bf16.mxu0 0
        %1100 = vmatpush1.bf16.msra.mxu0 0
        %1101 = vmatprep.mubr.bf16.mxu0 0
        %1102 = vmatmul.mubr.bf16.gmra.mrb[0].mxu0 %v1064
        %v1103 = vpop.f32.mrb[0].mxu0
        %v1104 = vadd.f32 0.0, %v1103
        %v1105 = vpop.f32.mrb[0].mxu0
        %v1106 = vpop.f32.mrb[0].mxu0
        %v1107 = vpop.f32.mrb[0].mxu0
        %1108 = vdwg.mxu0
        %v1109 = vrcp.pop %v1059
        %v1110 = vmul.f32 %v1104, %v1109
        %v1111 = vpack.c.bf16 %v1110, %v1110
        %v1112 = vld [vmem:[%s7 + $0x8] sm:$0xf]
        %v1114 = vsel %vm686, %v1111, 0
        %v1117 = vsel %vm746, %v1112, 0
        %1119 = vmatprep.subr.bf16.mxu0 0
        %1120 = vmatpush1.bf16.msra.mxu0 %v1117
        %1121 = vmatprep.subr.bf16.mxu0 0
        %1122 = vmatpush1.bf16.msra.mxu0 0
        %1123 = vmatprep.subr.bf16.mxu0 0
        %1124 = vmatpush1.bf16.msra.mxu0 0
        %1125 = vmatprep.subr.bf16.mxu0 0
        %1126 = vmatpush1.bf16.msra.mxu0 0
        %1127 = vmatprep.subr.bf16.mxu0 0
        %1128 = vmatpush1.bf16.msra.mxu0 0
        %1129 = vmatprep.subr.bf16.mxu0 0
        %1130 = vmatpush1.bf16.msra.mxu0 0
        %1131 = vmatprep.subr.bf16.mxu0 0
        %1132 = vmatpush1.bf16.msra.mxu0 0
        %1133 = vmatprep.subr.bf16.mxu0 0
        %1134 = vmatpush1.bf16.msra.mxu0 0
        %1135 = vmatprep.subr.bf16.mxu0 0
        %1136 = vmatpush1.bf16.msra.mxu0 0
        %1137 = vmatprep.subr.bf16.mxu0 0
        %1138 = vmatpush1.bf16.msra.mxu0 0
        %1139 = vmatprep.subr.bf16.mxu0 0
        %1140 = vmatpush1.bf16.msra.mxu0 0
        %1141 = vmatprep.subr.bf16.mxu0 0
        %1142 = vmatpush1.bf16.msra.mxu0 0
        %1143 = vmatprep.subr.bf16.mxu0 0
        %1144 = vmatpush1.bf16.msra.mxu0 0
        %1145 = vmatprep.subr.bf16.mxu0 0
        %1146 = vmatpush1.bf16.msra.mxu0 0
        %1147 = vmatprep.subr.bf16.mxu0 0
        %1148 = vmatpush1.bf16.msra.mxu0 0
        %1149 = vmatprep.subr.bf16.mxu0 0
        %1150 = vmatpush1.bf16.msra.mxu0 0
        %1151 = vmatprep.mubr.bf16.mxu0 0
        %1152 = vmatmul.mubr.bf16.gmra.mrb[0].mxu0 %v1114
        %v1153 = vpop.f32.mrb[0].mxu0
        %v1154 = vadd.f32 0.0, %v1153
        %v1155 = vpop.f32.mrb[0].mxu0
        %v1156 = vpop.f32.mrb[0].mxu0
        %v1157 = vpop.f32.mrb[0].mxu0
        %1158 = vdwg.mxu0
        %v1159 = vadd.f32 %v996, %v1154
        %1160 = vrot.lane.b32.xlu0 %v683, 104
        %v1161 = vpop.permute.xlu0 %1160
        %1162 = vrot.lane.b32.xlu0 %v684, 104
        %v1163 = vpop.permute.xlu0 %1162
        %v1165 = vsel %vm686, %v1161, 0
        %v1168 = vsel %vm686, %v1163, 0
        %1170 = vmatprep.subr.bf16.mxu0 0
        %1171 = vmatpush1.bf16.xpose.msra.mxu0 %v1168
        %1172 = vmatprep.subr.bf16.mxu0 0
        %1173 = vmatpush1.bf16.xpose.msra.mxu0 0
        %1174 = vmatprep.subr.bf16.mxu0 0
        %1175 = vmatpush1.bf16.xpose.msra.mxu0 0
        %1176 = vmatprep.subr.bf16.mxu0 0
        %1177 = vmatpush1.bf16.xpose.msra.mxu0 0
        %1178 = vmatprep.subr.bf16.mxu0 0
        %1179 = vmatpush1.bf16.xpose.msra.mxu0 0
        %1180 = vmatprep.subr.bf16.mxu0 0
        %1181 = vmatpush1.bf16.xpose.msra.mxu0 0
        %1182 = vmatprep.subr.bf16.mxu0 0
        %1183 = vmatpush1.bf16.xpose.msra.mxu0 0
        %1184 = vmatprep.subr.bf16.mxu0 0
        %1185 = vmatpush1.bf16.xpose.msra.mxu0 0
        %1186 = vmatprep.subr.bf16.mxu0 0
        %1187 = vmatpush1.bf16.xpose.msra.mxu0 0
        %1188 = vmatprep.subr.bf16.mxu0 0
        %1189 = vmatpush1.bf16.xpose.msra.mxu0 0
        %1190 = vmatprep.subr.bf16.mxu0 0
        %1191 = vmatpush1.bf16.xpose.msra.mxu0 0
        %1192 = vmatprep.subr.bf16.mxu0 0
        %1193 = vmatpush1.bf16.xpose.msra.mxu0 0
        %1194 = vmatprep.subr.bf16.mxu0 0
        %1195 = vmatpush1.bf16.xpose.msra.mxu0 0
        %1196 = vmatprep.subr.bf16.mxu0 0
        %1197 = vmatpush1.bf16.xpose.msra.mxu0 0
        %1198 = vmatprep.subr.bf16.mxu0 0
        %1199 = vmatpush1.bf16.xpose.msra.mxu0 0
        %1200 = vmatprep.subr.bf16.mxu0 0
        %1201 = vmatpush1.bf16.xpose.msra.mxu0 0
        %1202 = vmatprep.mubr.bf16.mxu0 0
        %1203 = vmatmul.mubr.bf16.gmra.mrb[0].mxu0 %v1165
        %v1204 = vpop.f32.mrb[0].mxu0
        %v1205 = vadd.f32 0.0, %v1204
        %v1206 = vpop.f32.mrb[0].mxu0
        %v1207 = vpop.f32.mrb[0].mxu0
        %v1208 = vpop.f32.mrb[0].mxu0
        %1209 = vdwg.mxu0
        %v1210 = vsel %vm686, %v1205, -inf
        %1211 = vmax.xlane.f32.xlu0 %v1210
        %v1212 = vpop.xlane.xlu0 %1211
        %v1213 = vsub.f32 %v1205, %v1212
        %v1214 = vmul.f32 %v1213, 1.442695
        %v1215 = vpow.pop %v1214
        %v1216 = vsel %vm686, %v1215, 0.0
        %1217 = vadd.xlane.f32.xlu0 %v1216
        %v1218 = vpop.xlane.xlu0 %1217
        %v1219 = vpack.c.bf16 %v1215, %v1215
        %1220 = vrot.lane.b32.xlu0 %v685, 104
        %v1221 = vpop.permute.xlu0 %1220
        %v1223 = vsel %vm686, %v1219, 0
        %v1226 = vsel %vm746, %v1221, 0
        %1228 = vmatprep.subr.bf16.mxu0 0
        %1229 = vmatpush1.bf16.msra.mxu0 %v1226
        %1230 = vmatprep.subr.bf16.mxu0 0
        %1231 = vmatpush1.bf16.msra.mxu0 0
        %1232 = vmatprep.subr.bf16.mxu0 0
        %1233 = vmatpush1.bf16.msra.mxu0 0
        %1234 = vmatprep.subr.bf16.mxu0 0
        %1235 = vmatpush1.bf16.msra.mxu0 0
        %1236 = vmatprep.subr.bf16.mxu0 0
        %1237 = vmatpush1.bf16.msra.mxu0 0
        %1238 = vmatprep.subr.bf16.mxu0 0
        %1239 = vmatpush1.bf16.msra.mxu0 0
        %1240 = vmatprep.subr.bf16.mxu0 0
        %1241 = vmatpush1.bf16.msra.mxu0 0
        %1242 = vmatprep.subr.bf16.mxu0 0
        %1243 = vmatpush1.bf16.msra.mxu0 0
        %1244 = vmatprep.subr.bf16.mxu0 0
        %1245 = vmatpush1.bf16.msra.mxu0 0
        %1246 = vmatprep.subr.bf16.mxu0 0
        %1247 = vmatpush1.bf16.msra.mxu0 0
        %1248 = vmatprep.subr.bf16.mxu0 0
        %1249 = vmatpush1.bf16.msra.mxu0 0
        %1250 = vmatprep.subr.bf16.mxu0 0
        %1251 = vmatpush1.bf16.msra.mxu0 0
        %1252 = vmatprep.subr.bf16.mxu0 0
        %1253 = vmatpush1.bf16.msra.mxu0 0
        %1254 = vmatprep.subr.bf16.mxu0 0
        %1255 = vmatpush1.bf16.msra.mxu0 0
        %1256 = vmatprep.subr.bf16.mxu0 0
        %1257 = vmatpush1.bf16.msra.mxu0 0
        %1258 = vmatprep.subr.bf16.mxu0 0
        %1259 = vmatpush1.bf16.msra.mxu0 0
        %1260 = vmatprep.mubr.bf16.mxu0 0
        %1261 = vmatmul.mubr.bf16.gmra.mrb[0].mxu0 %v1223
        %v1262 = vpop.f32.mrb[0].mxu0
        %v1263 = vadd.f32 0.0, %v1262
        %v1264 = vpop.f32.mrb[0].mxu0
        %v1265 = vpop.f32.mrb[0].mxu0
        %v1266 = vpop.f32.mrb[0].mxu0
        %1267 = vdwg.mxu0
        %v1268 = vrcp.pop %v1218
        %v1269 = vmul.f32 %v1263, %v1268
        %v1270 = vpack.c.bf16 %v1269, %v1269
        %v1271 = vld [vmem:[%s7 + $0xc] sm:$0xf]
        %v1273 = vsel %vm686, %v1270, 0
        %v1276 = vsel %vm746, %v1271, 0
        %1278 = vmatprep.subr.bf16.mxu0 0
        %1279 = vmatpush1.bf16.msra.mxu0 %v1276
        %1280 = vmatprep.subr.bf16.mxu0 0
        %1281 = vmatpush1.bf16.msra.mxu0 0
        %1282 = vmatprep.subr.bf16.mxu0 0
        %1283 = vmatpush1.bf16.msra.mxu0 0
        %1284 = vmatprep.subr.bf16.mxu0 0
        %1285 = vmatpush1.bf16.msra.mxu0 0
        %1286 = vmatprep.subr.bf16.mxu0 0
        %1287 = vmatpush1.bf16.msra.mxu0 0
        %1288 = vmatprep.subr.bf16.mxu0 0
        %1289 = vmatpush1.bf16.msra.mxu0 0
        %1290 = vmatprep.subr.bf16.mxu0 0
        %1291 = vmatpush1.bf16.msra.mxu0 0
        %1292 = vmatprep.subr.bf16.mxu0 0
        %1293 = vmatpush1.bf16.msra.mxu0 0
        %1294 = vmatprep.subr.bf16.mxu0 0
        %1295 = vmatpush1.bf16.msra.mxu0 0
        %1296 = vmatprep.subr.bf16.mxu0 0
        %1297 = vmatpush1.bf16.msra.mxu0 0
        %1298 = vmatprep.subr.bf16.mxu0 0
        %1299 = vmatpush1.bf16.msra.mxu0 0
        %1300 = vmatprep.subr.bf16.mxu0 0
        %1301 = vmatpush1.bf16.msra.mxu0 0
        %1302 = vmatprep.subr.bf16.mxu0 0
        %1303 = vmatpush1.bf16.msra.mxu0 0
        %1304 = vmatprep.subr.bf16.mxu0 0
        %1305 = vmatpush1.bf16.msra.mxu0 0
        %1306 = vmatprep.subr.bf16.mxu0 0
        %1307 = vmatpush1.bf16.msra.mxu0 0
        %1308 = vmatprep.subr.bf16.mxu0 0
        %1309 = vmatpush1.bf16.msra.mxu0 0
        %1310 = vmatprep.mubr.bf16.mxu0 0
        %1311 = vmatmul.mubr.bf16.gmra.mrb[0].mxu0 %v1273
        %v1312 = vpop.f32.mrb[0].mxu0
        %v1313 = vadd.f32 0.0, %v1312
        %v1314 = vpop.f32.mrb[0].mxu0
        %v1315 = vpop.f32.mrb[0].mxu0
        %v1316 = vpop.f32.mrb[0].mxu0
        %1317 = vdwg.mxu0
        %v1318 = vadd.f32 %v1159, %v1313
        %v1319 = vld [vmem:[%s8] sm:$0x1]
        %v1321 = vlaneseq
        %v1322 = vshrl.u32 %v1321, 7
        %v1323 = vsub.s32 0, %v1322
        %v1324 = vrot.slane %v1319, %v1323
        %v1326 = vadd.f32 %v1318, %v1324
        %1327 = vst [vmem:[%s337] sm:$0xff] %v1326
        %s1328 = sand.u32 %s239, 1
        %s1329 = scalar_lea.sflag [#allocation3], %s1328
        %s1330 = sand.u32 %s239, 1
        %s1331 = smul.addr %s1330, 8
        %s1332 = scalar_lea.vmem [#allocation2], %s1331
        // Predicated region
        $region57: #{tpu_custom_call.1} parent=55 // pred_check
          %p1333 = pneg %p249
        $region58: #{tpu_custom_call.1} parent=55 // pred_check_branch
          %1335 = sbr.rel (%p1333) target = $region60
        $region59: #{tpu_custom_call.1} parent=55 // pred_region
          %s1337 = ssub.s32 128, 128
          %1338 = vsyncadd %s1329, %s1337
          %s1339 = sadd.s32 %s28, %s27
          %s1340 = smul.addr %s1339, 128
          %s1341 = scalar_lea.hbm %s9, %s1340
          %s1343 = sshll.u32 %s1332, 4
          %s1344 = int_to_ptr.vmem [resolvable:$true] %s1343
          %1346 = dma.vmem_to_hbm [thread:$0]  %s1344, 128, %s1341, %s1329
        $region60: #{tpu_custom_call.1} parent=55 // pred_fallthru
          _
      $region56: #{tpu_custom_call.1} parent=5 // pred_fallthru
        _
      %p1347 = scmp.le.s32.totalorder 2, %s18
      // Predicated region
      $region61: #{tpu_custom_call.1} parent=5 // pred_check
        %p1348 = pneg %p1347
      $region62: #{tpu_custom_call.1} parent=5 // pred_check_branch
        %1350 = sbr.rel (%p1348) target = $region64
      $region63: #{tpu_custom_call.1} parent=5 // pred_region
        %s1351 = ssub.s32 %s18, 2
        // Predicated region
        $region65: #{tpu_custom_call.1} parent=63 // pred_check
          %p1352 = pneg %p255
        $region66: #{tpu_custom_call.1} parent=63 // pred_check_branch
          %1354 = sbr.rel (%p1352) target = $region68
        $region67: #{tpu_custom_call.1} parent=63 // pred_region
          %s1355 = sand.u32 %s240, 1
          %s1356 = scalar_lea.sflag [#allocation3], %s1355
          %s1357 = sand.u32 %s240, 1
          %s1358 = smul.addr %s1357, 8
          %s1359 = scalar_lea.vmem [#allocation2], %s1358
          %1360 = dma.done %s1356, 128
        $region68: #{tpu_custom_call.1} parent=63 // pred_fallthru
          _
      $region64: #{tpu_custom_call.1} parent=5 // pred_fallthru
        _
    $region6: #{tpu_custom_call.1} parent=1 // loop_footer
      %s22 = sadd.s32 1, %s18
    $region7: #{tpu_custom_call.1} parent=1 // loop_footer_branch
      %17 = sbr.rel target = $region3
    $region8: #{tpu_custom_call.1} parent=1 // loop_exit
      _
    %1361 = vsyncpa [#allocation3], 1
    %s1362 = scalar_lea.sflag [#allocation3], 1
    %1363 = vsyncpa %s1362, 1

</llo_original>
